<compile_context>
chip_gen: v7x
topology: tpu7x:2x2x1
jax: 0.10.0
libtpu: 0.0.40
codegen_flags: <defaults>
</compile_context>

<pallas_src>
import jax
import jax.numpy as jnp
from jax.experimental import pallas as pl
from jax.experimental.pallas import tpu as pltpu


def _bahdanau_kernel(enc_ref, ws_ref, dec_ref, wt_ref, bt_ref, va_ref, out_ref):
    # enc_ref: (TS*B, H1)  rows are seq-major: row r <-> (seq = r // B, batch = r % B)
    # ws_ref : (A, H1)   wt_ref: (A, H2)   dec_ref: (B, H2)
    # bt_ref : (1, A)    va_ref: (1, A)    out_ref: (B, TS)
    B, TS = out_ref.shape
    A = ws_ref.shape[0]

    # Encoder projection on the MXU, contracting the hidden dim of both
    # operands (weights stay in native (A, H1) layout): (TS*B, A), f32 accum.
    enc_att = jax.lax.dot_general(
        enc_ref[...], ws_ref[...],
        dimension_numbers=(((1,), (1,)), ((), ())),
        preferred_element_type=jnp.float32)

    # Decoder projection + bias: (B, A) in f32.  Recomputed per tile (cheap)
    # so the seq grid axis can be "parallel" (megacore) without an init hazard.
    dec_att = jax.lax.dot_general(
        dec_ref[...], wt_ref[...],
        dimension_numbers=(((1,), (1,)), ((), ())),
        preferred_element_type=jnp.float32) + bt_ref[...]

    # Rows of this tile are seq-major with batch minor, so broadcasting the
    # decoder projection over the tile is a sublane-tile of the (B, A) block.
    dec_b = jnp.tile(dec_att, (TS, 1))                  # (TS*B, A), f32

    # 2-D elementwise path: add + tanh (EUP) + weight by v_a, all (TS*B, A) f32.
    t = jnp.tanh(enc_att + dec_b)
    tv = t * va_ref[...]                                # broadcast (1, A)

    # Reduce over the attention dim -> (TS, B).  The split-leading-dim reshape
    # keeps the lane (A) layout untouched.
    red_sb = jnp.sum(tv.reshape(TS, B, A), axis=-1)     # (TS, B), f32

    # Lane-dense (B, TS) output block: transpose the tiny per-tile score block
    # with an identity matmul on the MXU instead of a vector relayout.
    eye_b = (jax.lax.broadcasted_iota(jnp.int32, (B, B), 0) ==
             jax.lax.broadcasted_iota(jnp.int32, (B, B), 1)).astype(jnp.float32)
    out_bs = jax.lax.dot_general(
        eye_b, red_sb,
        dimension_numbers=(((1,), (1,)), ((), ())),
        preferred_element_type=jnp.float32)             # (B, TS)

    out_ref[...] = out_bs.astype(out_ref.dtype)


def _choose_seq_tile(seq_len, batch, hid_dim1, att_dim, enc_itemsize,
                     max_seq_tile=None):
    """Largest lane-aligned (multiple-of-128) seq tile dividing seq_len that fits."""
    if seq_len % 128 != 0:
        # Small / odd sequence lengths: single full-array tile (block shape ==
        # full array dims, so the (8, 128) BlockSpec rule is trivially met).
        return seq_len
    # ~24 MiB of explicit per-tile buffers (double-buffered enc tile + f32
    # intermediates + output tile): safe under v7x's 64 MiB VMEM with the
    # 48 MiB scoped limit below, and leaves plenty of slack on v5e/v6e.
    budget = 24 * 1024 * 1024
    best = 128
    for ts in range(128, seq_len + 1, 128):
        if seq_len % ts != 0:
            continue
        if max_seq_tile is not None and ts > max_seq_tile:
            continue
        per_tile = (ts * batch * (2 * hid_dim1 * enc_itemsize + 3 * att_dim * 4)
                    + 2 * batch * ts * 4)
        if per_tile <= budget:
            best = ts
    return best


def bahdanau_score(dec_out, enc_outs, W_s, W_t, b_t, v_a, *, max_seq_tile=None):
    """
    dec_out : (batch, hid_dim2)
    enc_outs: (seq_len, batch, hid_dim1)   (native dtype; bf16 is fine)
    W_s     : (att_dim, hid_dim1)   PyTorch Linear weight layout
    W_t     : (att_dim, hid_dim2)
    b_t     : (att_dim,)
    v_a     : (att_dim, 1)
    returns : (batch, seq_len) float32 scores
    """
    S, B, H1 = enc_outs.shape
    Bd, H2 = dec_out.shape
    A = W_s.shape[0]
    assert Bd == B

    # Free, row-major flatten: row r <-> (seq = r // B, batch = r % B).
    enc_flat = enc_outs.reshape(S * B, H1)              # native dtype, no upcast
    w_s = W_s.astype(enc_flat.dtype)                    # native (A, H1) layout
    w_t = W_t.astype(dec_out.dtype)                     # native (A, H2) layout
    b_t2 = b_t.reshape(1, A).astype(jnp.float32)
    v_a2 = v_a.reshape(1, A).astype(jnp.float32)

    ts = _choose_seq_tile(S, B, H1, A, enc_flat.dtype.itemsize, max_seq_tile)
    grid = (S // ts,)

    return pl.pallas_call(
        _bahdanau_kernel,
        out_shape=jax.ShapeDtypeStruct((B, S), jnp.float32),
        grid=grid,
        in_specs=[
            # enc tile: (ts*B, H1) rows, marching down the row (seq) axis.
            pl.BlockSpec((ts * B, H1), lambda i: (i, 0)),
            # Small operands: full-array blocks with a constant index (resident).
            pl.BlockSpec((A, H1), lambda i: (0, 0)),
            pl.BlockSpec((B, H2), lambda i: (0, 0)),
            pl.BlockSpec((A, H2), lambda i: (0, 0)),
            pl.BlockSpec((1, A), lambda i: (0, 0)),
            pl.BlockSpec((1, A), lambda i: (0, 0)),
        ],
        # Lane-dense (B, ts) output block per grid step.
        out_specs=pl.BlockSpec((B, ts), lambda i: (0, i)),
        compiler_params=pltpu.CompilerParams(
            dimension_semantics=("parallel",),   # v7x: shard seq tiles over 2 TCs
            vmem_limit_bytes=48 << 20,           # headroom on v7x's 64 MiB VMEM
        ),
    )(enc_flat, w_s, dec_out, w_t, b_t2, v_a2)


def _reference(dec_out, enc_outs, W_s, W_t, b_t, v_a):
    S, B, H1 = enc_outs.shape
    enc_att = (enc_outs.reshape(-1, H1) @ W_s.T).reshape(S, B, -1)
    dec_att = dec_out @ W_t.T + b_t
    t = jnp.tanh(enc_att + dec_att[None, :, :])           # (S, B, A)
    return jnp.einsum("sba,a->bs", t, v_a[:, 0])           # (B, S)


if __name__ == "__main__":
    # Small shapes; seq_len chosen so the tiled grid (2 steps of 128) is exercised.
    seq_len, batch = 256, 2
    hid_dim1, hid_dim2, att_dim = 32, 32, 16

    key = jax.random.PRNGKey(0)
    k_enc, k_dec, k_ws, k_wt, k_bt, k_va = jax.random.split(key, 6)

    enc_outs = jax.random.normal(k_enc, (seq_len, batch, hid_dim1), dtype=jnp.float32)
    dec_out = jax.random.normal(k_dec, (batch, hid_dim2), dtype=jnp.float32)

    # Deterministic parameter init (shapes from the module's __init__)
    W_s = jax.random.uniform(k_ws, (att_dim, hid_dim1), minval=-0.1, maxval=0.1)
    W_t = jax.random.uniform(k_wt, (att_dim, hid_dim2), minval=-0.1, maxval=0.1)
    b_t = jax.random.uniform(k_bt, (att_dim,), minval=-0.1, maxval=0.1)
    v_a = jax.random.uniform(k_va, (att_dim, 1), minval=-0.05, maxval=0.05)

    out = bahdanau_score(dec_out, enc_outs, W_s, W_t, b_t, v_a, max_seq_tile=128)
    out = jax.block_until_ready(out)

    ref = _reference(dec_out, enc_outs, W_s, W_t, b_t, v_a)
    assert out.shape == (batch, seq_len), out.shape
    assert jnp.allclose(out, ref, atol=1e-4, rtol=1e-4), float(
        jnp.max(jnp.abs(out - ref)))

    print("KERNEL_OK")
</pallas_src>

<mosaic_0001>
module attributes {stable_mosaic.version = 11 : i64} {
  func.func @_bahdanau_kernel(%arg0: i32, %arg1: memref<256x32xf32, #tpu.memory_space<vmem>>, %arg2: memref<16x32xf32, #tpu.memory_space<vmem>>, %arg3: memref<2x32xf32, #tpu.memory_space<vmem>>, %arg4: memref<16x32xf32, #tpu.memory_space<vmem>>, %arg5: memref<1x16xf32, #tpu.memory_space<vmem>>, %arg6: memref<1x16xf32, #tpu.memory_space<vmem>>, %arg7: memref<2x128xf32, #tpu.memory_space<vmem>>) attributes {dimension_semantics = [#tpu.dimension_semantics<parallel>], iteration_bounds = array<i64: 2>, scalar_prefetch = 0 : i64, scratch_operands = 0 : i64, tpu.core_type = #tpu.core_type<tc>, window_params = [{transform_indices = @transform_0, window_bounds = array<i64: 256, 32>}, {pipeline_mode = #tpu.pipeline_mode<synchronous>, transform_indices = @transform_1, window_bounds = array<i64: 16, 32>}, {pipeline_mode = #tpu.pipeline_mode<synchronous>, transform_indices = @transform_2, window_bounds = array<i64: 2, 32>}, {pipeline_mode = #tpu.pipeline_mode<synchronous>, transform_indices = @transform_3, window_bounds = array<i64: 16, 32>}, {pipeline_mode = #tpu.pipeline_mode<synchronous>, transform_indices = @transform_4, window_bounds = array<i64: 1, 16>}, {pipeline_mode = #tpu.pipeline_mode<synchronous>, transform_indices = @transform_5, window_bounds = array<i64: 1, 16>}, {transform_indices = @transform_6, window_bounds = array<i64: 2, 128>}]} {
    %c0 = arith.constant 0 : index
    %c0_0 = arith.constant 0 : index
    %0 = vector.load %arg1[%c0, %c0_0] : memref<256x32xf32, #tpu.memory_space<vmem>>, vector<256x32xf32>
    %c0_1 = arith.constant 0 : index
    %c0_2 = arith.constant 0 : index
    %1 = vector.load %arg2[%c0_1, %c0_2] : memref<16x32xf32, #tpu.memory_space<vmem>>, vector<16x32xf32>
    %cst = arith.constant dense<0.000000e+00> : vector<256x16xf32>
    %2 = tpu.matmul %0, %1, %cst {dimension_numbers = #tpu.dot_dimension_numbers<[1], [1], [0], [0], [0, 0, 1, 0], [], []>} : vector<256x32xf32>, vector<16x32xf32>, vector<256x16xf32> -> vector<256x16xf32>
    %c0_3 = arith.constant 0 : index
    %c0_4 = arith.constant 0 : index
    %3 = vector.load %arg3[%c0_3, %c0_4] : memref<2x32xf32, #tpu.memory_space<vmem>>, vector<2x32xf32>
    %c0_5 = arith.constant 0 : index
    %c0_6 = arith.constant 0 : index
    %4 = vector.load %arg4[%c0_5, %c0_6] : memref<16x32xf32, #tpu.memory_space<vmem>>, vector<16x32xf32>
    %cst_7 = arith.constant dense<0.000000e+00> : vector<2x16xf32>
    %5 = tpu.matmul %3, %4, %cst_7 {dimension_numbers = #tpu.dot_dimension_numbers<[1], [1], [0], [0], [0, 0, 1, 0], [], []>} : vector<2x32xf32>, vector<16x32xf32>, vector<2x16xf32> -> vector<2x16xf32>
    %c0_8 = arith.constant 0 : index
    %c0_9 = arith.constant 0 : index
    %6 = vector.load %arg5[%c0_8, %c0_9] : memref<1x16xf32, #tpu.memory_space<vmem>>, vector<1x16xf32>
    %7 = vector.broadcast %6 : vector<1x16xf32> to vector<2x16xf32>
    %8 = arith.addf %5, %7 : vector<2x16xf32>
    %9 = tpu.concatenate %8, %8, %8, %8, %8, %8, %8, %8, %8, %8, %8, %8, %8, %8, %8, %8, %8, %8, %8, %8, %8, %8, %8, %8, %8, %8, %8, %8, %8, %8, %8, %8, %8, %8, %8, %8, %8, %8, %8, %8, %8, %8, %8, %8, %8, %8, %8, %8, %8, %8, %8, %8, %8, %8, %8, %8, %8, %8, %8, %8, %8, %8, %8, %8, %8, %8, %8, %8, %8, %8, %8, %8, %8, %8, %8, %8, %8, %8, %8, %8, %8, %8, %8, %8, %8, %8, %8, %8, %8, %8, %8, %8, %8, %8, %8, %8, %8, %8, %8, %8, %8, %8, %8, %8, %8, %8, %8, %8, %8, %8, %8, %8, %8, %8, %8, %8, %8, %8, %8, %8, %8, %8, %8, %8, %8, %8, %8, %8 in 0 : vector<2x16xf32>, vector<2x16xf32>, vector<2x16xf32>, vector<2x16xf32>, vector<2x16xf32>, vector<2x16xf32>, vector<2x16xf32>, vector<2x16xf32>, vector<2x16xf32>, vector<2x16xf32>, vector<2x16xf32>, vector<2x16xf32>, vector<2x16xf32>, vector<2x16xf32>, vector<2x16xf32>, vector<2x16xf32>, vector<2x16xf32>, vector<2x16xf32>, vector<2x16xf32>, vector<2x16xf32>, vector<2x16xf32>, vector<2x16xf32>, vector<2x16xf32>, vector<2x16xf32>, vector<2x16xf32>, vector<2x16xf32>, vector<2x16xf32>, vector<2x16xf32>, vector<2x16xf32>, vector<2x16xf32>, vector<2x16xf32>, vector<2x16xf32>, vector<2x16xf32>, vector<2x16xf32>, vector<2x16xf32>, vector<2x16xf32>, vector<2x16xf32>, vector<2x16xf32>, vector<2x16xf32>, vector<2x16xf32>, vector<2x16xf32>, vector<2x16xf32>, vector<2x16xf32>, vector<2x16xf32>, vector<2x16xf32>, vector<2x16xf32>, vector<2x16xf32>, vector<2x16xf32>, vector<2x16xf32>, vector<2x16xf32>, vector<2x16xf32>, vector<2x16xf32>, vector<2x16xf32>, vector<2x16xf32>, vector<2x16xf32>, vector<2x16xf32>, vector<2x16xf32>, vector<2x16xf32>, vector<2x16xf32>, vector<2x16xf32>, vector<2x16xf32>, vector<2x16xf32>, vector<2x16xf32>, vector<2x16xf32>, vector<2x16xf32>, vector<2x16xf32>, vector<2x16xf32>, vector<2x16xf32>, vector<2x16xf32>, vector<2x16xf32>, vector<2x16xf32>, vector<2x16xf32>, vector<2x16xf32>, vector<2x16xf32>, vector<2x16xf32>, vector<2x16xf32>, vector<2x16xf32>, vector<2x16xf32>, vector<2x16xf32>, vector<2x16xf32>, vector<2x16xf32>, vector<2x16xf32>, vector<2x16xf32>, vector<2x16xf32>, vector<2x16xf32>, vector<2x16xf32>, vector<2x16xf32>, vector<2x16xf32>, vector<2x16xf32>, vector<2x16xf32>, vector<2x16xf32>, vector<2x16xf32>, vector<2x16xf32>, vector<2x16xf32>, vector<2x16xf32>, vector<2x16xf32>, vector<2x16xf32>, vector<2x16xf32>, vector<2x16xf32>, vector<2x16xf32>, vector<2x16xf32>, vector<2x16xf32>, vector<2x16xf32>, vector<2x16xf32>, vector<2x16xf32>, vector<2x16xf32>, vector<2x16xf32>, vector<2x16xf32>, vector<2x16xf32>, vector<2x16xf32>, vector<2x16xf32>, vector<2x16xf32>, vector<2x16xf32>, vector<2x16xf32>, vector<2x16xf32>, vector<2x16xf32>, vector<2x16xf32>, vector<2x16xf32>, vector<2x16xf32>, vector<2x16xf32>, vector<2x16xf32>, vector<2x16xf32>, vector<2x16xf32>, vector<2x16xf32>, vector<2x16xf32>, vector<2x16xf32>, vector<2x16xf32>, vector<2x16xf32> -> vector<256x16xf32>
    %10 = arith.addf %2, %9 : vector<256x16xf32>
    %11 = math.tanh %10 : vector<256x16xf32>
    %c0_10 = arith.constant 0 : index
    %c0_11 = arith.constant 0 : index
    %12 = vector.load %arg6[%c0_10, %c0_11] : memref<1x16xf32, #tpu.memory_space<vmem>>, vector<1x16xf32>
    %13 = vector.broadcast %12 : vector<1x16xf32> to vector<256x16xf32>
    %14 = arith.mulf %11, %13 : vector<256x16xf32>
    %15 = vector.shape_cast %14 : vector<256x16xf32> to vector<128x2x16xf32>
    %cst_12 = arith.constant dense<0.000000e+00> : vector<128x2xf32>
    %16 = vector.multi_reduction <add>, %15, %cst_12 [2] : vector<128x2x16xf32> to vector<128x2xf32>
    %17 = tpu.iota {dimensions = array<i32: 0>} : vector<2x2xi32>
    %18 = tpu.iota {dimensions = array<i32: 1>} : vector<2x2xi32>
    %19 = arith.cmpi eq, %17, %18 : vector<2x2xi32>
    %20 = arith.extui %19 : vector<2x2xi1> to vector<2x2xi32>
    %21 = arith.sitofp %20 : vector<2x2xi32> to vector<2x2xf32>
    %cst_13 = arith.constant dense<0.000000e+00> : vector<2x128xf32>
    %22 = tpu.matmul %21, %16, %cst_13 {dimension_numbers = #tpu.dot_dimension_numbers<[1], [1], [0], [0], [0, 0, 1, 0], [], []>} : vector<2x2xf32>, vector<128x2xf32>, vector<2x128xf32> -> vector<2x128xf32>
    %c0_14 = arith.constant 0 : index
    %c0_15 = arith.constant 0 : index
    %23 = vector.load %arg7[%c0_14, %c0_15] : memref<2x128xf32, #tpu.memory_space<vmem>>, vector<2x128xf32>
    tpu.vector_store %arg7[%c0_14, %c0_15], %22 {strides = array<i32>} : memref<2x128xf32, #tpu.memory_space<vmem>>, vector<2x128xf32>,
    return
  }
  func.func @transform_0(%arg0: i32) -> (i32, i32) {
    %c0_i32 = arith.constant 0 : i32
    %c0_i32_0 = arith.constant 0 : i32
    return %arg0, %c0_i32 : i32, i32
  }
  func.func @transform_1(%arg0: i32) -> (i32, i32) {
    %c0_i32 = arith.constant 0 : i32
    %c0_i32_0 = arith.constant 0 : i32
    %c0_i32_1 = arith.constant 0 : i32
    return %c0_i32, %c0_i32_0 : i32, i32
  }
  func.func @transform_2(%arg0: i32) -> (i32, i32) {
    %c0_i32 = arith.constant 0 : i32
    %c0_i32_0 = arith.constant 0 : i32
    %c0_i32_1 = arith.constant 0 : i32
    return %c0_i32, %c0_i32_0 : i32, i32
  }
  func.func @transform_3(%arg0: i32) -> (i32, i32) {
    %c0_i32 = arith.constant 0 : i32
    %c0_i32_0 = arith.constant 0 : i32
    %c0_i32_1 = arith.constant 0 : i32
    return %c0_i32, %c0_i32_0 : i32, i32
  }
  func.func @transform_4(%arg0: i32) -> (i32, i32) {
    %c0_i32 = arith.constant 0 : i32
    %c0_i32_0 = arith.constant 0 : i32
    %c0_i32_1 = arith.constant 0 : i32
    return %c0_i32, %c0_i32_0 : i32, i32
  }
  func.func @transform_5(%arg0: i32) -> (i32, i32) {
    %c0_i32 = arith.constant 0 : i32
    %c0_i32_0 = arith.constant 0 : i32
    %c0_i32_1 = arith.constant 0 : i32
    return %c0_i32, %c0_i32_0 : i32, i32
  }
  func.func @transform_6(%arg0: i32) -> (i32, i32) {
    %c0_i32 = arith.constant 0 : i32
    %c0_i32_0 = arith.constant 0 : i32
    return %c0_i32, %arg0 : i32, i32
  }
}

</mosaic_0001>

<llo_original>
// kernel: tpu_custom_call.1
$region0: #{tpu_custom_call.1}
  #allocation0 [shape = 'u32[]', space=smem, size = 0x4, offset = 0x4, fixed_abs, tag = 'smem constant byte address 0x4 - core index']
  #allocation1 [shape = 'u32[144,128]{1,0:T(1,128)}', space=vmem, size = 0x12000, scoped, tag = 'internal scratch']
  %s0 = inlined_call_operand.vmem [shape: f32[512,32], index: 0, kind: input, shape index: {}]
  %s1 = inlined_call_operand.vmem [shape: f32[16,32], index: 1, kind: input, shape index: {}]
  %s2 = inlined_call_operand.vmem [shape: f32[2,32], index: 2, kind: input, shape index: {}]
  %s3 = inlined_call_operand.vmem [shape: f32[16,32], index: 3, kind: input, shape index: {}]
  %s4 = inlined_call_operand.vmem [shape: f32[1,16], index: 4, kind: input, shape index: {}]
  %s5 = inlined_call_operand.vmem [shape: f32[1,16], index: 5, kind: input, shape index: {}]
  %s6 = inlined_call_operand.hbm [shape: f32[2,256], index: 6, kind: output, shape index: {}]
  %s7 = sld [smem:[#allocation0]]
  $region57: #{tpu_custom_call.1} parent=0
    _
  %s9 = ssub.s32 1, %s7
  %s10 = scalar_select 0, %s9, %s7
  $region1: #{tpu_custom_call.1} parent=0
    #allocation2 [shape = 'u8[2048]{0}', space=vmem, size = 0x800, scoped, tag = 'output window, operand 0']
    #allocation3 [shape = 's32[2]{0}', space=sflag, size = 0x8, scoped, tag = 'scoped memory for tpu_custom_call.1']
    %11 = vsyncpa [#allocation3], 0
    %s12 = scalar_lea.sflag [#allocation3], 1
    %13 = vsyncpa %s12, 0
    loop: start=0, step=1, limit=4
    $region2: #{tpu_custom_call.1} parent=1 // loop_pre_header
      _
    $region3: #{tpu_custom_call.1} parent=1 // loop_header
      %s15 = sphi 0, %s19
      %p16 = scmp.ge.s32.totalorder %s15, 4
      %s25 = sphi 0, %s27
      %s28 = sphi 0, %s25
      %s29 = sphi 0, %s28
      %s45 = sphi 0, %s29
      %s49 = sphi 0, %s49
      %s51 = sphi 0, %s49
      %s52 = sphi 0, %s51
      %s66 = sphi 0, %s52
      %s70 = sphi 0, %s70
      %s72 = sphi 0, %s70
      %s73 = sphi 0, %s72
      %s87 = sphi 0, %s73
      %s91 = sphi 0, %s91
      %s93 = sphi 0, %s91
      %s94 = sphi 0, %s93
      %s108 = sphi 0, %s94
      %s112 = sphi 0, %s112
      %s114 = sphi 0, %s112
      %s115 = sphi 0, %s114
      %s129 = sphi 0, %s115
      %s133 = sphi 0, %s133
      %s135 = sphi 0, %s133
      %s136 = sphi 0, %s135
      %s150 = sphi 0, %s136
      %s156 = sphi 0, %s158
      %s159 = sphi 0, %s156
      %s160 = sphi 0, %s159
      %s176 = sphi 0, %s160
    $region4: #{tpu_custom_call.1} parent=1 // loop_header_branch
      %18 = sbr.rel (%p16) target = $region8
    $region5: #{tpu_custom_call.1} parent=1 // loop_body
      %s20 = ssub.s32 %s15, 1
      %s21 = ssub.s32 %s15, 2
      %s22 = sadd.s32 %s15, 1
      %s23 = ssub.s32 %s15, %s22
      %p24 = scmp.eq.s32.totalorder %s23, 0
      %s26 = sadd.s32 %s25, 1
      %s27 = scalar_select %p24, %s25, %s26
      %p30 = pneg %p24
      %p31 = scmp.eq.s32.totalorder %s15, 1
      %p32 = por %p30, %p31
      %p33 = scmp.ne.s32.totalorder %s25, %s28
      %p34 = scmp.eq.s32.totalorder %s15, 0
      %p35 = por %p33, %p34
      %p36 = scmp.ne.s32.totalorder %s25, %s28
      %p37 = scmp.eq.s32.totalorder %s20, 1
      %p38 = por %p36, %p37
      %p39 = scmp.ne.s32.totalorder %s28, %s29
      %p40 = scmp.eq.s32.totalorder %s20, 0
      %p41 = por %p39, %p40
      %p42 = scmp.ne.s32.totalorder %s28, %s29
      %p43 = scmp.eq.s32.totalorder %s21, 1
      %p44 = por %p42, %p43
      %p46 = scmp.ne.s32.totalorder %s29, %s45
      %p47 = scmp.eq.s32.totalorder %s21, 0
      %p48 = por %p46, %p47
      %s50 = sadd.s32 %s49, 1
      %p53 = scmp.eq.s32.totalorder %s15, 1
      %p54 = scmp.ne.s32.totalorder %s49, %s51
      %p55 = scmp.eq.s32.totalorder %s15, 0
      %p56 = por %p54, %p55
      %p57 = scmp.ne.s32.totalorder %s49, %s51
      %p58 = scmp.eq.s32.totalorder %s20, 1
      %p59 = por %p57, %p58
      %p60 = scmp.ne.s32.totalorder %s51, %s52
      %p61 = scmp.eq.s32.totalorder %s20, 0
      %p62 = por %p60, %p61
      %p63 = scmp.ne.s32.totalorder %s51, %s52
      %p64 = scmp.eq.s32.totalorder %s21, 1
      %p65 = por %p63, %p64
      %p67 = scmp.ne.s32.totalorder %s52, %s66
      %p68 = scmp.eq.s32.totalorder %s21, 0
      %p69 = por %p67, %p68
      %s71 = sadd.s32 %s70, 1
      %p74 = scmp.eq.s32.totalorder %s15, 1
      %p75 = scmp.ne.s32.totalorder %s70, %s72
      %p76 = scmp.eq.s32.totalorder %s15, 0
      %p77 = por %p75, %p76
      %p78 = scmp.ne.s32.totalorder %s70, %s72
      %p79 = scmp.eq.s32.totalorder %s20, 1
      %p80 = por %p78, %p79
      %p81 = scmp.ne.s32.totalorder %s72, %s73
      %p82 = scmp.eq.s32.totalorder %s20, 0
      %p83 = por %p81, %p82
      %p84 = scmp.ne.s32.totalorder %s72, %s73
      %p85 = scmp.eq.s32.totalorder %s21, 1
      %p86 = por %p84, %p85
      %p88 = scmp.ne.s32.totalorder %s73, %s87
      %p89 = scmp.eq.s32.totalorder %s21, 0
      %p90 = por %p88, %p89
      %s92 = sadd.s32 %s91, 1
      %p95 = scmp.eq.s32.totalorder %s15, 1
      %p96 = scmp.ne.s32.totalorder %s91, %s93
      %p97 = scmp.eq.s32.totalorder %s15, 0
      %p98 = por %p96, %p97
      %p99 = scmp.ne.s32.totalorder %s91, %s93
      %p100 = scmp.eq.s32.totalorder %s20, 1
      %p101 = por %p99, %p100
      %p102 = scmp.ne.s32.totalorder %s93, %s94
      %p103 = scmp.eq.s32.totalorder %s20, 0
      %p104 = por %p102, %p103
      %p105 = scmp.ne.s32.totalorder %s93, %s94
      %p106 = scmp.eq.s32.totalorder %s21, 1
      %p107 = por %p105, %p106
      %p109 = scmp.ne.s32.totalorder %s94, %s108
      %p110 = scmp.eq.s32.totalorder %s21, 0
      %p111 = por %p109, %p110
      %s113 = sadd.s32 %s112, 1
      %p116 = scmp.eq.s32.totalorder %s15, 1
      %p117 = scmp.ne.s32.totalorder %s112, %s114
      %p118 = scmp.eq.s32.totalorder %s15, 0
      %p119 = por %p117, %p118
      %p120 = scmp.ne.s32.totalorder %s112, %s114
      %p121 = scmp.eq.s32.totalorder %s20, 1
      %p122 = por %p120, %p121
      %p123 = scmp.ne.s32.totalorder %s114, %s115
      %p124 = scmp.eq.s32.totalorder %s20, 0
      %p125 = por %p123, %p124
      %p126 = scmp.ne.s32.totalorder %s114, %s115
      %p127 = scmp.eq.s32.totalorder %s21, 1
      %p128 = por %p126, %p127
      %p130 = scmp.ne.s32.totalorder %s115, %s129
      %p131 = scmp.eq.s32.totalorder %s21, 0
      %p132 = por %p130, %p131
      %s134 = sadd.s32 %s133, 1
      %p137 = scmp.eq.s32.totalorder %s15, 1
      %p138 = scmp.ne.s32.totalorder %s133, %s135
      %p139 = scmp.eq.s32.totalorder %s15, 0
      %p140 = por %p138, %p139
      %p141 = scmp.ne.s32.totalorder %s133, %s135
      %p142 = scmp.eq.s32.totalorder %s20, 1
      %p143 = por %p141, %p142
      %p144 = scmp.ne.s32.totalorder %s135, %s136
      %p145 = scmp.eq.s32.totalorder %s20, 0
      %p146 = por %p144, %p145
      %p147 = scmp.ne.s32.totalorder %s135, %s136
      %p148 = scmp.eq.s32.totalorder %s21, 1
      %p149 = por %p147, %p148
      %p151 = scmp.ne.s32.totalorder %s136, %s150
      %p152 = scmp.eq.s32.totalorder %s21, 0
      %p153 = por %p151, %p152
      %s154 = ssub.s32 %s15, %s22
      %p155 = scmp.eq.s32.totalorder %s154, 0
      %s157 = sadd.s32 %s156, 1
      %s158 = scalar_select %p155, %s156, %s157
      %p161 = pneg %p155
      %p162 = scmp.eq.s32.totalorder %s15, 1
      %p163 = por %p161, %p162
      %p164 = scmp.ne.s32.totalorder %s156, %s159
      %p165 = scmp.eq.s32.totalorder %s15, 0
      %p166 = por %p164, %p165
      %p167 = scmp.ne.s32.totalorder %s156, %s159
      %p168 = scmp.eq.s32.totalorder %s20, 1
      %p169 = por %p167, %p168
      %p170 = scmp.ne.s32.totalorder %s159, %s160
      %p171 = scmp.eq.s32.totalorder %s20, 0
      %p172 = por %p170, %p171
      %p173 = scmp.ne.s32.totalorder %s159, %s160
      %p174 = scmp.eq.s32.totalorder %s21, 1
      %p175 = por %p173, %p174
      %p177 = scmp.ne.s32.totalorder %s160, %s176
      %p178 = scmp.eq.s32.totalorder %s21, 0
      %p179 = por %p177, %p178
      %p180 = scmp.le.s32.totalorder 1, %s15
      %p181 = scmp.lt.s32.totalorder %s15, 3
      %p182 = pnand %p180, %p181
      %p183 = pneg %p182
      // Predicated region
      $region9: #{tpu_custom_call.1} parent=5 // pred_check
        _
      $region10: #{tpu_custom_call.1} parent=5 // pred_check_branch
        %185 = sbr.rel (%p182) target = $region12
      $region11: #{tpu_custom_call.1} parent=5 // pred_region
        %s186 = ssub.s32 %s15, 1
        // Predicated region
        $region13: #{tpu_custom_call.1} parent=11 // pred_check
          %p187 = pneg %p62
        $region14: #{tpu_custom_call.1} parent=11 // pred_check_branch
          %189 = sbr.rel (%p187) target = $region16
        $region15: #{tpu_custom_call.1} parent=11 // pred_region
          _
        $region16: #{tpu_custom_call.1} parent=11 // pred_fallthru
          _
        // Predicated region
        $region17: #{tpu_custom_call.1} parent=11 // pred_check
          %p190 = pneg %p83
        $region18: #{tpu_custom_call.1} parent=11 // pred_check_branch
          %192 = sbr.rel (%p190) target = $region20
        $region19: #{tpu_custom_call.1} parent=11 // pred_region
          _
        $region20: #{tpu_custom_call.1} parent=11 // pred_fallthru
          _
        // Predicated region
        $region21: #{tpu_custom_call.1} parent=11 // pred_check
          %p193 = pneg %p104
        $region22: #{tpu_custom_call.1} parent=11 // pred_check_branch
          %195 = sbr.rel (%p193) target = $region24
        $region23: #{tpu_custom_call.1} parent=11 // pred_region
          _
        $region24: #{tpu_custom_call.1} parent=11 // pred_fallthru
          _
        // Predicated region
        $region25: #{tpu_custom_call.1} parent=11 // pred_check
          %p196 = pneg %p125
        $region26: #{tpu_custom_call.1} parent=11 // pred_check_branch
          %198 = sbr.rel (%p196) target = $region28
        $region27: #{tpu_custom_call.1} parent=11 // pred_region
          _
        $region28: #{tpu_custom_call.1} parent=11 // pred_fallthru
          _
        // Predicated region
        $region29: #{tpu_custom_call.1} parent=11 // pred_check
          %p199 = pneg %p146
        $region30: #{tpu_custom_call.1} parent=11 // pred_check_branch
          %201 = sbr.rel (%p199) target = $region32
        $region31: #{tpu_custom_call.1} parent=11 // pred_region
          _
        $region32: #{tpu_custom_call.1} parent=11 // pred_fallthru
          _
      $region12: #{tpu_custom_call.1} parent=5 // pred_fallthru
        _
      %p202 = scmp.lt.s32.totalorder %s15, 2
      // Predicated region
      $region33: #{tpu_custom_call.1} parent=5 // pred_check
        %p203 = pneg %p202
      $region34: #{tpu_custom_call.1} parent=5 // pred_check_branch
        %205 = sbr.rel (%p203) target = $region36
      $region35: #{tpu_custom_call.1} parent=5 // pred_region
        // Predicated region
        $region37: #{tpu_custom_call.1} parent=35 // pred_check
          %p206 = pneg %p35
        $region38: #{tpu_custom_call.1} parent=35 // pred_check_branch
          %208 = sbr.rel (%p206) target = $region40
        $region39: #{tpu_custom_call.1} parent=35 // pred_region
          %s209 = smul.u32 32, %s15
          %p210 = scmp.lt.s32.totalorder %s209, 63
          %s211 = scalar_select %p210, %s209, 63
          %s212 = smul.addr %s211, 8
          %s213 = scalar_lea.vmem %s0, %s212
          %s214 = smul.u32 32, %s15
        $region40: #{tpu_custom_call.1} parent=35 // pred_fallthru
          _
      $region36: #{tpu_custom_call.1} parent=5 // pred_fallthru
        _
      %p215 = scmp.le.s32.totalorder 1, %s15
      %p216 = scmp.lt.s32.totalorder %s15, 3
      %p217 = pnand %p215, %p216
      %p218 = pneg %p217
      // Predicated region
      $region41: #{tpu_custom_call.1} parent=5 // pred_check
        _
      $region42: #{tpu_custom_call.1} parent=5 // pred_check_branch
        %220 = sbr.rel (%p217) target = $region44
      $region43: #{tpu_custom_call.1} parent=5 // pred_region
        %s221 = ssub.s32 %s15, 1
        %s222 = smul.u32 32, %s20
        %p223 = scmp.lt.s32.totalorder %s222, 63
        %s224 = scalar_select %p223, %s222, 63
        %s225 = smul.addr %s224, 8
        %s226 = scalar_lea.vmem %s0, %s225
        %p227 = pneg %p41
        %p228 = pneg %p38
        %p229 = pneg %p62
        %p230 = pneg %p59
        %p231 = pneg %p83
        %p232 = pneg %p80
        %p233 = pneg %p104
        %p234 = pneg %p101
        %p235 = pneg %p125
        %p236 = pneg %p122
        %p237 = pneg %p146
        %p238 = pneg %p143
        %p239 = pneg %p172
        %p240 = pneg %p169
        %s241 = sand.u32 %s159, 1
        %s242 = scalar_lea.sflag [#allocation3], %s241
        %s243 = sand.u32 %s159, 1
        %s244 = smul.addr %s243, 2
        %s245 = scalar_lea.vmem [#allocation2], %s244
        %s246 = smul.u32 32, %s20
        %p247 = scmp.lt.s32.totalorder %s246, 63
        %s248 = scalar_select %p247, %s246, 63
        %s249 = smul.addr %s248, 8
        %s250 = scalar_lea.vmem %s0, %s249
        %s251 = smul.u32 32, %s20
        %v252 = vld [vmem:[%s250] sm:$0xff]
        %v253 = vld [vmem:[%s250 + $0x8] sm:$0xff]
        %v254 = vld [vmem:[%s250 + $0x10] sm:$0xff]
        %v255 = vld [vmem:[%s250 + $0x18] sm:$0xff]
        %v256 = vld [vmem:[%s250 + $0x20] sm:$0xff]
        %v257 = vld [vmem:[%s250 + $0x28] sm:$0xff]
        %v258 = vld [vmem:[%s250 + $0x30] sm:$0xff]
        %v259 = vld [vmem:[%s250 + $0x38] sm:$0xff]
        %v260 = vld [vmem:[%s250 + $0x40] sm:$0xff]
        %v261 = vld [vmem:[%s250 + $0x48] sm:$0xff]
        %v262 = vld [vmem:[%s250 + $0x50] sm:$0xff]
        %v263 = vld [vmem:[%s250 + $0x58] sm:$0xff]
        %v264 = vld [vmem:[%s250 + $0x60] sm:$0xff]
        %v265 = vld [vmem:[%s250 + $0x68] sm:$0xff]
        %v266 = vld [vmem:[%s250 + $0x70] sm:$0xff]
        %v267 = vld [vmem:[%s250 + $0x78] sm:$0xff]
        %v268 = vld [vmem:[%s250 + $0x80] sm:$0xff]
        %v269 = vld [vmem:[%s250 + $0x88] sm:$0xff]
        %v270 = vld [vmem:[%s250 + $0x90] sm:$0xff]
        %v271 = vld [vmem:[%s250 + $0x98] sm:$0xff]
        %v272 = vld [vmem:[%s250 + $0xa0] sm:$0xff]
        %v273 = vld [vmem:[%s250 + $0xa8] sm:$0xff]
        %v274 = vld [vmem:[%s250 + $0xb0] sm:$0xff]
        %v275 = vld [vmem:[%s250 + $0xb8] sm:$0xff]
        %v276 = vld [vmem:[%s250 + $0xc0] sm:$0xff]
        %v277 = vld [vmem:[%s250 + $0xc8] sm:$0xff]
        %v278 = vld [vmem:[%s250 + $0xd0] sm:$0xff]
        %v279 = vld [vmem:[%s250 + $0xd8] sm:$0xff]
        %v280 = vld [vmem:[%s250 + $0xe0] sm:$0xff]
        %v281 = vld [vmem:[%s250 + $0xe8] sm:$0xff]
        %v282 = vld [vmem:[%s250 + $0xf0] sm:$0xff]
        %v283 = vld [vmem:[%s250 + $0xf8] sm:$0xff]
        %v284 = vld [vmem:[%s1] sm:$0xff]
        %v285 = vld [vmem:[%s1 + $0x8] sm:$0xff]
        %v286 = vld [vmem:[%s2] sm:$0x3]
        %v287 = vld [vmem:[%s3] sm:$0xff]
        %v288 = vld [vmem:[%s3 + $0x8] sm:$0xff]
        %v289 = vld [vmem:[%s4] sm:$0x1]
        %v291 = vlaneseq
        %v292 = vshrl.u32 %v291, 7
        %v293 = vsub.s32 0, %v292
        %v294 = vrot.slane %v289, %v293
        %vm296 = vcmask 261120
        %v298 = vsel %vm296, %v286, 0
        %v301 = vsel %vm296, %v287, 0
        %v304 = vsel %vm296, %v288, 0
        %306 = vmatprep.subr.mxu0 0.0
        %307 = vmatpush1.xpose.msra.mxu0 %v301
        %308 = vmatprep.subr.mxu0 0.0
        %309 = vmatpush1.xpose.msra.mxu0 %v304
        %310 = vmatprep.subr.mxu0 0.0
        %311 = vmatpush1.xpose.msra.mxu0 0.0
        %312 = vmatprep.subr.mxu0 0.0
        %313 = vmatpush1.xpose.msra.mxu0 0.0
        %314 = vmatprep.subr.mxu0 0.0
        %315 = vmatpush1.xpose.msra.mxu0 0.0
        %316 = vmatprep.subr.mxu0 0.0
        %317 = vmatpush1.xpose.msra.mxu0 0.0
        %318 = vmatprep.subr.mxu0 0.0
        %319 = vmatpush1.xpose.msra.mxu0 0.0
        %320 = vmatprep.subr.mxu0 0.0
        %321 = vmatpush1.xpose.msra.mxu0 0.0
        %322 = vmatprep.subr.mxu0 0.0
        %323 = vmatpush1.xpose.msra.mxu0 0.0
        %324 = vmatprep.subr.mxu0 0.0
        %325 = vmatpush1.xpose.msra.mxu0 0.0
        %326 = vmatprep.subr.mxu0 0.0
        %327 = vmatpush1.xpose.msra.mxu0 0.0
        %328 = vmatprep.subr.mxu0 0.0
        %329 = vmatpush1.xpose.msra.mxu0 0.0
        %330 = vmatprep.subr.mxu0 0.0
        %331 = vmatpush1.xpose.msra.mxu0 0.0
        %332 = vmatprep.subr.mxu0 0.0
        %333 = vmatpush1.xpose.msra.mxu0 0.0
        %334 = vmatprep.subr.mxu0 0.0
        %335 = vmatpush1.xpose.msra.mxu0 0.0
        %336 = vmatprep.subr.mxu0 0.0
        %337 = vmatpush1.xpose.msra.mxu0 0.0
        %338 = vmatprep.subr.mxu0 0.0
        %339 = vmatpush1.xpose.msra.mxu0 0.0
        %340 = vmatprep.subr.mxu0 0.0
        %341 = vmatpush1.xpose.msra.mxu0 0.0
        %342 = vmatprep.subr.mxu0 0.0
        %343 = vmatpush1.xpose.msra.mxu0 0.0
        %344 = vmatprep.subr.mxu0 0.0
        %345 = vmatpush1.xpose.msra.mxu0 0.0
        %346 = vmatprep.subr.mxu0 0.0
        %347 = vmatpush1.xpose.msra.mxu0 0.0
        %348 = vmatprep.subr.mxu0 0.0
        %349 = vmatpush1.xpose.msra.mxu0 0.0
        %350 = vmatprep.subr.mxu0 0.0
        %351 = vmatpush1.xpose.msra.mxu0 0.0
        %352 = vmatprep.subr.mxu0 0.0
        %353 = vmatpush1.xpose.msra.mxu0 0.0
        %354 = vmatprep.subr.mxu0 0.0
        %355 = vmatpush1.xpose.msra.mxu0 0.0
        %356 = vmatprep.subr.mxu0 0.0
        %357 = vmatpush1.xpose.msra.mxu0 0.0
        %358 = vmatprep.subr.mxu0 0.0
        %359 = vmatpush1.xpose.msra.mxu0 0.0
        %360 = vmatprep.subr.mxu0 0.0
        %361 = vmatpush1.xpose.msra.mxu0 0.0
        %362 = vmatprep.subr.mxu0 0.0
        %363 = vmatpush1.xpose.msra.mxu0 0.0
        %364 = vmatprep.subr.mxu0 0.0
        %365 = vmatpush1.xpose.msra.mxu0 0.0
        %366 = vmatprep.subr.mxu0 0.0
        %367 = vmatpush1.xpose.msra.mxu0 0.0
        %368 = vmatprep.subr.mxu0 0.0
        %369 = vmatpush1.xpose.msra.mxu0 0.0
        %370 = vmatprep.mubr.f32.mxu0 0.0
        %371 = vmatmul.mubr.f32.gmra.mrb[0].mxu0 %v298
        %v372 = vpop.f32.mrb[0].mxu0
        %v373 = vadd.f32 %v294, %v372
        %v374 = vpop.f32.mrb[0].mxu0
        %375 = vdwg.mxu0
        %v377 = vrot.slane %v373, 6
        %v379 = vrot.slane %v373, 4
        %v381 = vrot.slane %v373, 2
        %vm383 = vcmask 1041408
        %v384 = vsel %vm383, %v373, %v377
        %vm385 = vcmask 1043456
        %v386 = vsel %vm385, %v384, %v379
        %vm387 = vcmask 1045504
        %v388 = vsel %vm387, %v386, %v381
        %v390 = vsel %vm296, %v252, 0
        %v393 = vsel %vm296, %v253, 0
        %v396 = vsel %vm296, %v254, 0
        %v399 = vsel %vm296, %v255, 0
        %v402 = vsel %vm296, %v256, 0
        %v405 = vsel %vm296, %v257, 0
        %v408 = vsel %vm296, %v258, 0
        %v411 = vsel %vm296, %v259, 0
        %v414 = vsel %vm296, %v260, 0
        %v417 = vsel %vm296, %v261, 0
        %v420 = vsel %vm296, %v262, 0
        %v423 = vsel %vm296, %v263, 0
        %v426 = vsel %vm296, %v264, 0
        %v429 = vsel %vm296, %v265, 0
        %v432 = vsel %vm296, %v266, 0
        %v435 = vsel %vm296, %v267, 0
        %v438 = vsel %vm296, %v268, 0
        %v441 = vsel %vm296, %v269, 0
        %v444 = vsel %vm296, %v270, 0
        %v447 = vsel %vm296, %v271, 0
        %v450 = vsel %vm296, %v272, 0
        %v453 = vsel %vm296, %v273, 0
        %v456 = vsel %vm296, %v274, 0
        %v459 = vsel %vm296, %v275, 0
        %v462 = vsel %vm296, %v276, 0
        %v465 = vsel %vm296, %v277, 0
        %v468 = vsel %vm296, %v278, 0
        %v471 = vsel %vm296, %v279, 0
        %v474 = vsel %vm296, %v280, 0
        %v477 = vsel %vm296, %v281, 0
        %v480 = vsel %vm296, %v282, 0
        %v483 = vsel %vm296, %v283, 0
        %v486 = vsel %vm296, %v284, 0
        %v489 = vsel %vm296, %v285, 0
        %491 = vmatprep.subr.mxu0 0.0
        %492 = vmatpush1.xpose.msra.mxu0 %v486
        %493 = vmatprep.subr.mxu0 0.0
        %494 = vmatpush1.xpose.msra.mxu0 %v489
        %495 = vmatprep.subr.mxu0 0.0
        %496 = vmatpush1.xpose.msra.mxu0 0.0
        %497 = vmatprep.subr.mxu0 0.0
        %498 = vmatpush1.xpose.msra.mxu0 0.0
        %499 = vmatprep.subr.mxu0 0.0
        %500 = vmatpush1.xpose.msra.mxu0 0.0
        %501 = vmatprep.subr.mxu0 0.0
        %502 = vmatpush1.xpose.msra.mxu0 0.0
        %503 = vmatprep.subr.mxu0 0.0
        %504 = vmatpush1.xpose.msra.mxu0 0.0
        %505 = vmatprep.subr.mxu0 0.0
        %506 = vmatpush1.xpose.msra.mxu0 0.0
        %507 = vmatprep.subr.mxu0 0.0
        %508 = vmatpush1.xpose.msra.mxu0 0.0
        %509 = vmatprep.subr.mxu0 0.0
        %510 = vmatpush1.xpose.msra.mxu0 0.0
        %511 = vmatprep.subr.mxu0 0.0
        %512 = vmatpush1.xpose.msra.mxu0 0.0
        %513 = vmatprep.subr.mxu0 0.0
        %514 = vmatpush1.xpose.msra.mxu0 0.0
        %515 = vmatprep.subr.mxu0 0.0
        %516 = vmatpush1.xpose.msra.mxu0 0.0
        %517 = vmatprep.subr.mxu0 0.0
        %518 = vmatpush1.xpose.msra.mxu0 0.0
        %519 = vmatprep.subr.mxu0 0.0
        %520 = vmatpush1.xpose.msra.mxu0 0.0
        %521 = vmatprep.subr.mxu0 0.0
        %522 = vmatpush1.xpose.msra.mxu0 0.0
        %523 = vmatprep.subr.mxu0 0.0
        %524 = vmatpush1.xpose.msra.mxu0 0.0
        %525 = vmatprep.subr.mxu0 0.0
        %526 = vmatpush1.xpose.msra.mxu0 0.0
        %527 = vmatprep.subr.mxu0 0.0
        %528 = vmatpush1.xpose.msra.mxu0 0.0
        %529 = vmatprep.subr.mxu0 0.0
        %530 = vmatpush1.xpose.msra.mxu0 0.0
        %531 = vmatprep.subr.mxu0 0.0
        %532 = vmatpush1.xpose.msra.mxu0 0.0
        %533 = vmatprep.subr.mxu0 0.0
        %534 = vmatpush1.xpose.msra.mxu0 0.0
        %535 = vmatprep.subr.mxu0 0.0
        %536 = vmatpush1.xpose.msra.mxu0 0.0
        %537 = vmatprep.subr.mxu0 0.0
        %538 = vmatpush1.xpose.msra.mxu0 0.0
        %539 = vmatprep.subr.mxu0 0.0
        %540 = vmatpush1.xpose.msra.mxu0 0.0
        %541 = vmatprep.subr.mxu0 0.0
        %542 = vmatpush1.xpose.msra.mxu0 0.0
        %543 = vmatprep.subr.mxu0 0.0
        %544 = vmatpush1.xpose.msra.mxu0 0.0
        %545 = vmatprep.subr.mxu0 0.0
        %546 = vmatpush1.xpose.msra.mxu0 0.0
        %547 = vmatprep.subr.mxu0 0.0
        %548 = vmatpush1.xpose.msra.mxu0 0.0
        %549 = vmatprep.subr.mxu0 0.0
        %550 = vmatpush1.xpose.msra.mxu0 0.0
        %551 = vmatprep.subr.mxu0 0.0
        %552 = vmatpush1.xpose.msra.mxu0 0.0
        %553 = vmatprep.subr.mxu0 0.0
        %554 = vmatpush1.xpose.msra.mxu0 0.0
        %555 = vmatprep.mubr.f32.mxu0 0.0
        %556 = vmatmul.mubr.f32.gmra.mrb[0].mxu0 %v390
        %v557 = vpop.f32.mrb[0].mxu0
        %v558 = vadd.f32 %v388, %v557
        %v559 = vpop.f32.mrb[0].mxu0
        %560 = vmatprep.mubr.f32.mxu0 0.0
        %561 = vmatmul.mubr.f32.gmra.mrb[0].mxu0 %v393
        %v562 = vpop.f32.mrb[0].mxu0
        %v563 = vadd.f32 %v388, %v562
        %v564 = vpop.f32.mrb[0].mxu0
        %565 = vmatprep.mubr.f32.mxu0 0.0
        %566 = vmatmul.mubr.f32.gmra.mrb[0].mxu0 %v396
        %v567 = vpop.f32.mrb[0].mxu0
        %v568 = vadd.f32 %v388, %v567
        %v569 = vpop.f32.mrb[0].mxu0
        %570 = vmatprep.mubr.f32.mxu0 0.0
        %571 = vmatmul.mubr.f32.gmra.mrb[0].mxu0 %v399
        %v572 = vpop.f32.mrb[0].mxu0
        %v573 = vadd.f32 %v388, %v572
        %v574 = vpop.f32.mrb[0].mxu0
        %575 = vmatprep.mubr.f32.mxu0 0.0
        %576 = vmatmul.mubr.f32.gmra.mrb[0].mxu0 %v402
        %v577 = vpop.f32.mrb[0].mxu0
        %v578 = vadd.f32 %v388, %v577
        %v579 = vpop.f32.mrb[0].mxu0
        %580 = vmatprep.mubr.f32.mxu0 0.0
        %581 = vmatmul.mubr.f32.gmra.mrb[0].mxu0 %v405
        %v582 = vpop.f32.mrb[0].mxu0
        %v583 = vadd.f32 %v388, %v582
        %v584 = vpop.f32.mrb[0].mxu0
        %585 = vmatprep.mubr.f32.mxu0 0.0
        %586 = vmatmul.mubr.f32.gmra.mrb[0].mxu0 %v408
        %v587 = vpop.f32.mrb[0].mxu0
        %v588 = vadd.f32 %v388, %v587
        %v589 = vpop.f32.mrb[0].mxu0
        %590 = vmatprep.mubr.f32.mxu0 0.0
        %591 = vmatmul.mubr.f32.gmra.mrb[0].mxu0 %v411
        %v592 = vpop.f32.mrb[0].mxu0
        %v593 = vadd.f32 %v388, %v592
        %v594 = vpop.f32.mrb[0].mxu0
        %595 = vmatprep.mubr.f32.mxu0 0.0
        %596 = vmatmul.mubr.f32.gmra.mrb[0].mxu0 %v414
        %v597 = vpop.f32.mrb[0].mxu0
        %v598 = vadd.f32 %v388, %v597
        %v599 = vpop.f32.mrb[0].mxu0
        %600 = vmatprep.mubr.f32.mxu0 0.0
        %601 = vmatmul.mubr.f32.gmra.mrb[0].mxu0 %v417
        %v602 = vpop.f32.mrb[0].mxu0
        %v603 = vadd.f32 %v388, %v602
        %v604 = vpop.f32.mrb[0].mxu0
        %605 = vmatprep.mubr.f32.mxu0 0.0
        %606 = vmatmul.mubr.f32.gmra.mrb[0].mxu0 %v420
        %v607 = vpop.f32.mrb[0].mxu0
        %v608 = vadd.f32 %v388, %v607
        %v609 = vpop.f32.mrb[0].mxu0
        %610 = vmatprep.mubr.f32.mxu0 0.0
        %611 = vmatmul.mubr.f32.gmra.mrb[0].mxu0 %v423
        %v612 = vpop.f32.mrb[0].mxu0
        %v613 = vadd.f32 %v388, %v612
        %v614 = vpop.f32.mrb[0].mxu0
        %615 = vmatprep.mubr.f32.mxu0 0.0
        %616 = vmatmul.mubr.f32.gmra.mrb[0].mxu0 %v426
        %v617 = vpop.f32.mrb[0].mxu0
        %v618 = vadd.f32 %v388, %v617
        %v619 = vpop.f32.mrb[0].mxu0
        %620 = vmatprep.mubr.f32.mxu0 0.0
        %621 = vmatmul.mubr.f32.gmra.mrb[0].mxu0 %v429
        %v622 = vpop.f32.mrb[0].mxu0
        %v623 = vadd.f32 %v388, %v622
        %v624 = vpop.f32.mrb[0].mxu0
        %625 = vmatprep.mubr.f32.mxu0 0.0
        %626 = vmatmul.mubr.f32.gmra.mrb[0].mxu0 %v432
        %v627 = vpop.f32.mrb[0].mxu0
        %v628 = vadd.f32 %v388, %v627
        %v629 = vpop.f32.mrb[0].mxu0
        %630 = vmatprep.mubr.f32.mxu0 0.0
        %631 = vmatmul.mubr.f32.gmra.mrb[0].mxu0 %v435
        %v632 = vpop.f32.mrb[0].mxu0
        %v633 = vadd.f32 %v388, %v632
        %v634 = vpop.f32.mrb[0].mxu0
        %635 = vmatprep.mubr.f32.mxu0 0.0
        %636 = vmatmul.mubr.f32.gmra.mrb[0].mxu0 %v438
        %v637 = vpop.f32.mrb[0].mxu0
        %v638 = vadd.f32 %v388, %v637
        %v639 = vpop.f32.mrb[0].mxu0
        %640 = vmatprep.mubr.f32.mxu0 0.0
        %641 = vmatmul.mubr.f32.gmra.mrb[0].mxu0 %v441
        %v642 = vpop.f32.mrb[0].mxu0
        %v643 = vadd.f32 %v388, %v642
        %v644 = vpop.f32.mrb[0].mxu0
        %645 = vmatprep.mubr.f32.mxu0 0.0
        %646 = vmatmul.mubr.f32.gmra.mrb[0].mxu0 %v444
        %v647 = vpop.f32.mrb[0].mxu0
        %v648 = vadd.f32 %v388, %v647
        %v649 = vpop.f32.mrb[0].mxu0
        %650 = vmatprep.mubr.f32.mxu0 0.0
        %651 = vmatmul.mubr.f32.gmra.mrb[0].mxu0 %v447
        %v652 = vpop.f32.mrb[0].mxu0
        %v653 = vadd.f32 %v388, %v652
        %v654 = vpop.f32.mrb[0].mxu0
        %655 = vmatprep.mubr.f32.mxu0 0.0
        %656 = vmatmul.mubr.f32.gmra.mrb[0].mxu0 %v450
        %v657 = vpop.f32.mrb[0].mxu0
        %v658 = vadd.f32 %v388, %v657
        %v659 = vpop.f32.mrb[0].mxu0
        %660 = vmatprep.mubr.f32.mxu0 0.0
        %661 = vmatmul.mubr.f32.gmra.mrb[0].mxu0 %v453
        %v662 = vpop.f32.mrb[0].mxu0
        %v663 = vadd.f32 %v388, %v662
        %v664 = vpop.f32.mrb[0].mxu0
        %665 = vmatprep.mubr.f32.mxu0 0.0
        %666 = vmatmul.mubr.f32.gmra.mrb[0].mxu0 %v456
        %v667 = vpop.f32.mrb[0].mxu0
        %v668 = vadd.f32 %v388, %v667
        %v669 = vpop.f32.mrb[0].mxu0
        %670 = vmatprep.mubr.f32.mxu0 0.0
        %671 = vmatmul.mubr.f32.gmra.mrb[0].mxu0 %v459
        %v672 = vpop.f32.mrb[0].mxu0
        %v673 = vadd.f32 %v388, %v672
        %v674 = vpop.f32.mrb[0].mxu0
        %675 = vmatprep.mubr.f32.mxu0 0.0
        %676 = vmatmul.mubr.f32.gmra.mrb[0].mxu0 %v462
        %v677 = vpop.f32.mrb[0].mxu0
        %v678 = vadd.f32 %v388, %v677
        %v679 = vpop.f32.mrb[0].mxu0
        %680 = vmatprep.mubr.f32.mxu0 0.0
        %681 = vmatmul.mubr.f32.gmra.mrb[0].mxu0 %v465
        %v682 = vpop.f32.mrb[0].mxu0
        %v683 = vadd.f32 %v388, %v682
        %v684 = vpop.f32.mrb[0].mxu0
        %685 = vmatprep.mubr.f32.mxu0 0.0
        %686 = vmatmul.mubr.f32.gmra.mrb[0].mxu0 %v468
        %v687 = vpop.f32.mrb[0].mxu0
        %v688 = vadd.f32 %v388, %v687
        %v689 = vpop.f32.mrb[0].mxu0
        %690 = vmatprep.mubr.f32.mxu0 0.0
        %691 = vmatmul.mubr.f32.gmra.mrb[0].mxu0 %v471
        %v692 = vpop.f32.mrb[0].mxu0
        %v693 = vadd.f32 %v388, %v692
        %v694 = vpop.f32.mrb[0].mxu0
        %695 = vmatprep.mubr.f32.mxu0 0.0
        %696 = vmatmul.mubr.f32.gmra.mrb[0].mxu0 %v474
        %v697 = vpop.f32.mrb[0].mxu0
        %v698 = vadd.f32 %v388, %v697
        %v699 = vpop.f32.mrb[0].mxu0
        %700 = vmatprep.mubr.f32.mxu0 0.0
        %701 = vmatmul.mubr.f32.gmra.mrb[0].mxu0 %v477
        %v702 = vpop.f32.mrb[0].mxu0
        %v703 = vadd.f32 %v388, %v702
        %v704 = vpop.f32.mrb[0].mxu0
        %705 = vmatprep.mubr.f32.mxu0 0.0
        %706 = vmatmul.mubr.f32.gmra.mrb[0].mxu0 %v480
        %v707 = vpop.f32.mrb[0].mxu0
        %v708 = vadd.f32 %v388, %v707
        %v709 = vpop.f32.mrb[0].mxu0
        %710 = vmatprep.mubr.f32.mxu0 0.0
        %711 = vmatmul.mubr.f32.gmra.mrb[0].mxu0 %v483
        %v712 = vpop.f32.mrb[0].mxu0
        %v713 = vadd.f32 %v388, %v712
        %v714 = vpop.f32.mrb[0].mxu0
        %715 = vdwg.mxu0
        %v716 = vtanh.pop %v558
        %v717 = vtanh.pop %v563
        %v718 = vtanh.pop %v568
        %v719 = vtanh.pop %v573
        %v720 = vtanh.pop %v578
        %v721 = vtanh.pop %v583
        %v722 = vtanh.pop %v588
        %v723 = vtanh.pop %v593
        %v724 = vtanh.pop %v598
        %v725 = vtanh.pop %v603
        %v726 = vtanh.pop %v608
        %v727 = vtanh.pop %v613
        %v728 = vtanh.pop %v618
        %v729 = vtanh.pop %v623
        %v730 = vtanh.pop %v628
        %v731 = vtanh.pop %v633
        %v732 = vtanh.pop %v638
        %v733 = vtanh.pop %v643
        %v734 = vtanh.pop %v648
        %v735 = vtanh.pop %v653
        %v736 = vtanh.pop %v658
        %v737 = vtanh.pop %v663
        %v738 = vtanh.pop %v668
        %v739 = vtanh.pop %v673
        %v740 = vtanh.pop %v678
        %v741 = vtanh.pop %v683
        %v742 = vtanh.pop %v688
        %v743 = vtanh.pop %v693
        %v744 = vtanh.pop %v698
        %v745 = vtanh.pop %v703
        %v746 = vtanh.pop %v708
        %v747 = vtanh.pop %v713
        %v748 = vld [vmem:[%s5] sm:$0x1]
        %v750 = vlaneseq
        %v751 = vshrl.u32 %v750, 7
        %v752 = vsub.s32 0, %v751
        %v753 = vrot.slane %v748, %v752
        %v755 = vmul.f32 %v716, %v753
        %v756 = vmul.f32 %v717, %v753
        %v757 = vmul.f32 %v718, %v753
        %v758 = vmul.f32 %v719, %v753
        %v759 = vmul.f32 %v720, %v753
        %v760 = vmul.f32 %v721, %v753
        %v761 = vmul.f32 %v722, %v753
        %v762 = vmul.f32 %v723, %v753
        %v763 = vmul.f32 %v724, %v753
        %v764 = vmul.f32 %v725, %v753
        %v765 = vmul.f32 %v726, %v753
        %v766 = vmul.f32 %v727, %v753
        %v767 = vmul.f32 %v728, %v753
        %v768 = vmul.f32 %v729, %v753
        %v769 = vmul.f32 %v730, %v753
        %v770 = vmul.f32 %v731, %v753
        %v771 = vmul.f32 %v732, %v753
        %v772 = vmul.f32 %v733, %v753
        %v773 = vmul.f32 %v734, %v753
        %v774 = vmul.f32 %v735, %v753
        %v775 = vmul.f32 %v736, %v753
        %v776 = vmul.f32 %v737, %v753
        %v777 = vmul.f32 %v738, %v753
        %v778 = vmul.f32 %v739, %v753
        %v779 = vmul.f32 %v740, %v753
        %v780 = vmul.f32 %v741, %v753
        %v781 = vmul.f32 %v742, %v753
        %v782 = vmul.f32 %v743, %v753
        %v783 = vmul.f32 %v744, %v753
        %v784 = vmul.f32 %v745, %v753
        %v785 = vmul.f32 %v746, %v753
        %v786 = vmul.f32 %v747, %v753
        %v819 = vcombine.high %v755, %v755
        %v821 = vunpack.c.l.s4 1983009808
        %v822 = vunpack.c.0.s8 %v821
        %v823 = vlaneseq
        %v824 = vshrl.u32 %v823, 7
        %v825 = vsub.s32 %v822, %v824
        %v826 = vrot.slane %v755, %v825
        %v828 = vunpack.c.l.s4 1983009808
        %v829 = vunpack.c.0.s8 %v828
        %v830 = vlaneseq
        %v831 = vshrl.u32 %v830, 7
        %v832 = vsub.s32 %v829, %v831
        %v833 = vrot.slane %v819, %v832
        %v834 = vcombine.high %v826, %v826
        %v835 = vcombine.high %v833, %v833
        %v836 = vcombine.high %v756, %v756
        %v838 = vunpack.c.l.s4 1983009808
        %v839 = vunpack.c.0.s8 %v838
        %v840 = vlaneseq
        %v841 = vshrl.u32 %v840, 7
        %v842 = vsub.s32 %v839, %v841
        %v843 = vrot.slane %v756, %v842
        %v845 = vunpack.c.l.s4 1983009808
        %v846 = vunpack.c.0.s8 %v845
        %v847 = vlaneseq
        %v848 = vshrl.u32 %v847, 7
        %v849 = vsub.s32 %v846, %v848
        %v850 = vrot.slane %v836, %v849
        %v851 = vcombine.high %v843, %v843
        %v852 = vcombine.high %v850, %v850
        %v853 = vcombine.high %v757, %v757
        %v855 = vunpack.c.l.s4 1983009808
        %v856 = vunpack.c.0.s8 %v855
        %v857 = vlaneseq
        %v858 = vshrl.u32 %v857, 7
        %v859 = vsub.s32 %v856, %v858
        %v860 = vrot.slane %v757, %v859
        %v862 = vunpack.c.l.s4 1983009808
        %v863 = vunpack.c.0.s8 %v862
        %v864 = vlaneseq
        %v865 = vshrl.u32 %v864, 7
        %v866 = vsub.s32 %v863, %v865
        %v867 = vrot.slane %v853, %v866
        %v868 = vcombine.high %v860, %v860
        %v869 = vcombine.high %v867, %v867
        %v870 = vcombine.high %v758, %v758
        %v872 = vunpack.c.l.s4 1983009808
        %v873 = vunpack.c.0.s8 %v872
        %v874 = vlaneseq
        %v875 = vshrl.u32 %v874, 7
        %v876 = vsub.s32 %v873, %v875
        %v877 = vrot.slane %v758, %v876
        %v879 = vunpack.c.l.s4 1983009808
        %v880 = vunpack.c.0.s8 %v879
        %v881 = vlaneseq
        %v882 = vshrl.u32 %v881, 7
        %v883 = vsub.s32 %v880, %v882
        %v884 = vrot.slane %v870, %v883
        %v885 = vcombine.high %v877, %v877
        %v886 = vcombine.high %v884, %v884
        %v887 = vcombine.high %v759, %v759
        %v889 = vunpack.c.l.s4 1983009808
        %v890 = vunpack.c.0.s8 %v889
        %v891 = vlaneseq
        %v892 = vshrl.u32 %v891, 7
        %v893 = vsub.s32 %v890, %v892
        %v894 = vrot.slane %v759, %v893
        %v896 = vunpack.c.l.s4 1983009808
        %v897 = vunpack.c.0.s8 %v896
        %v898 = vlaneseq
        %v899 = vshrl.u32 %v898, 7
        %v900 = vsub.s32 %v897, %v899
        %v901 = vrot.slane %v887, %v900
        %v902 = vcombine.high %v894, %v894
        %v903 = vcombine.high %v901, %v901
        %v904 = vcombine.high %v760, %v760
        %v906 = vunpack.c.l.s4 1983009808
        %v907 = vunpack.c.0.s8 %v906
        %v908 = vlaneseq
        %v909 = vshrl.u32 %v908, 7
        %v910 = vsub.s32 %v907, %v909
        %v911 = vrot.slane %v760, %v910
        %v913 = vunpack.c.l.s4 1983009808
        %v914 = vunpack.c.0.s8 %v913
        %v915 = vlaneseq
        %v916 = vshrl.u32 %v915, 7
        %v917 = vsub.s32 %v914, %v916
        %v918 = vrot.slane %v904, %v917
        %v919 = vcombine.high %v911, %v911
        %v920 = vcombine.high %v918, %v918
        %v921 = vcombine.high %v761, %v761
        %v923 = vunpack.c.l.s4 1983009808
        %v924 = vunpack.c.0.s8 %v923
        %v925 = vlaneseq
        %v926 = vshrl.u32 %v925, 7
        %v927 = vsub.s32 %v924, %v926
        %v928 = vrot.slane %v761, %v927
        %v930 = vunpack.c.l.s4 1983009808
        %v931 = vunpack.c.0.s8 %v930
        %v932 = vlaneseq
        %v933 = vshrl.u32 %v932, 7
        %v934 = vsub.s32 %v931, %v933
        %v935 = vrot.slane %v921, %v934
        %v936 = vcombine.high %v928, %v928
        %v937 = vcombine.high %v935, %v935
        %v938 = vcombine.high %v762, %v762
        %v940 = vunpack.c.l.s4 1983009808
        %v941 = vunpack.c.0.s8 %v940
        %v942 = vlaneseq
        %v943 = vshrl.u32 %v942, 7
        %v944 = vsub.s32 %v941, %v943
        %v945 = vrot.slane %v762, %v944
        %v947 = vunpack.c.l.s4 1983009808
        %v948 = vunpack.c.0.s8 %v947
        %v949 = vlaneseq
        %v950 = vshrl.u32 %v949, 7
        %v951 = vsub.s32 %v948, %v950
        %v952 = vrot.slane %v938, %v951
        %v953 = vcombine.high %v945, %v945
        %v954 = vcombine.high %v952, %v952
        %v955 = vcombine.high %v763, %v763
        %v957 = vunpack.c.l.s4 1983009808
        %v958 = vunpack.c.0.s8 %v957
        %v959 = vlaneseq
        %v960 = vshrl.u32 %v959, 7
        %v961 = vsub.s32 %v958, %v960
        %v962 = vrot.slane %v763, %v961
        %v964 = vunpack.c.l.s4 1983009808
        %v965 = vunpack.c.0.s8 %v964
        %v966 = vlaneseq
        %v967 = vshrl.u32 %v966, 7
        %v968 = vsub.s32 %v965, %v967
        %v969 = vrot.slane %v955, %v968
        %v970 = vcombine.high %v962, %v962
        %v971 = vcombine.high %v969, %v969
        %v972 = vcombine.high %v764, %v764
        %v974 = vunpack.c.l.s4 1983009808
        %v975 = vunpack.c.0.s8 %v974
        %v976 = vlaneseq
        %v977 = vshrl.u32 %v976, 7
        %v978 = vsub.s32 %v975, %v977
        %v979 = vrot.slane %v764, %v978
        %v981 = vunpack.c.l.s4 1983009808
        %v982 = vunpack.c.0.s8 %v981
        %v983 = vlaneseq
        %v984 = vshrl.u32 %v983, 7
        %v985 = vsub.s32 %v982, %v984
        %v986 = vrot.slane %v972, %v985
        %v987 = vcombine.high %v979, %v979
        %v988 = vcombine.high %v986, %v986
        %v989 = vcombine.high %v765, %v765
        %v991 = vunpack.c.l.s4 1983009808
        %v992 = vunpack.c.0.s8 %v991
        %v993 = vlaneseq
        %v994 = vshrl.u32 %v993, 7
        %v995 = vsub.s32 %v992, %v994
        %v996 = vrot.slane %v765, %v995
        %v998 = vunpack.c.l.s4 1983009808
        %v999 = vunpack.c.0.s8 %v998
        %v1000 = vlaneseq
        %v1001 = vshrl.u32 %v1000, 7
        %v1002 = vsub.s32 %v999, %v1001
        %v1003 = vrot.slane %v989, %v1002
        %v1004 = vcombine.high %v996, %v996
        %v1005 = vcombine.high %v1003, %v1003
        %v1006 = vcombine.high %v766, %v766
        %v1008 = vunpack.c.l.s4 1983009808
        %v1009 = vunpack.c.0.s8 %v1008
        %v1010 = vlaneseq
        %v1011 = vshrl.u32 %v1010, 7
        %v1012 = vsub.s32 %v1009, %v1011
        %v1013 = vrot.slane %v766, %v1012
        %v1015 = vunpack.c.l.s4 1983009808
        %v1016 = vunpack.c.0.s8 %v1015
        %v1017 = vlaneseq
        %v1018 = vshrl.u32 %v1017, 7
        %v1019 = vsub.s32 %v1016, %v1018
        %v1020 = vrot.slane %v1006, %v1019
        %v1021 = vcombine.high %v1013, %v1013
        %v1022 = vcombine.high %v1020, %v1020
        %v1023 = vcombine.high %v767, %v767
        %v1025 = vunpack.c.l.s4 1983009808
        %v1026 = vunpack.c.0.s8 %v1025
        %v1027 = vlaneseq
        %v1028 = vshrl.u32 %v1027, 7
        %v1029 = vsub.s32 %v1026, %v1028
        %v1030 = vrot.slane %v767, %v1029
        %v1032 = vunpack.c.l.s4 1983009808
        %v1033 = vunpack.c.0.s8 %v1032
        %v1034 = vlaneseq
        %v1035 = vshrl.u32 %v1034, 7
        %v1036 = vsub.s32 %v1033, %v1035
        %v1037 = vrot.slane %v1023, %v1036
        %v1038 = vcombine.high %v1030, %v1030
        %v1039 = vcombine.high %v1037, %v1037
        %v1040 = vcombine.high %v768, %v768
        %v1042 = vunpack.c.l.s4 1983009808
        %v1043 = vunpack.c.0.s8 %v1042
        %v1044 = vlaneseq
        %v1045 = vshrl.u32 %v1044, 7
        %v1046 = vsub.s32 %v1043, %v1045
        %v1047 = vrot.slane %v768, %v1046
        %v1049 = vunpack.c.l.s4 1983009808
        %v1050 = vunpack.c.0.s8 %v1049
        %v1051 = vlaneseq
        %v1052 = vshrl.u32 %v1051, 7
        %v1053 = vsub.s32 %v1050, %v1052
        %v1054 = vrot.slane %v1040, %v1053
        %v1055 = vcombine.high %v1047, %v1047
        %v1056 = vcombine.high %v1054, %v1054
        %v1057 = vcombine.high %v769, %v769
        %v1059 = vunpack.c.l.s4 1983009808
        %v1060 = vunpack.c.0.s8 %v1059
        %v1061 = vlaneseq
        %v1062 = vshrl.u32 %v1061, 7
        %v1063 = vsub.s32 %v1060, %v1062
        %v1064 = vrot.slane %v769, %v1063
        %v1066 = vunpack.c.l.s4 1983009808
        %v1067 = vunpack.c.0.s8 %v1066
        %v1068 = vlaneseq
        %v1069 = vshrl.u32 %v1068, 7
        %v1070 = vsub.s32 %v1067, %v1069
        %v1071 = vrot.slane %v1057, %v1070
        %v1072 = vcombine.high %v1064, %v1064
        %v1073 = vcombine.high %v1071, %v1071
        %v1074 = vcombine.high %v770, %v770
        %v1076 = vunpack.c.l.s4 1983009808
        %v1077 = vunpack.c.0.s8 %v1076
        %v1078 = vlaneseq
        %v1079 = vshrl.u32 %v1078, 7
        %v1080 = vsub.s32 %v1077, %v1079
        %v1081 = vrot.slane %v770, %v1080
        %v1083 = vunpack.c.l.s4 1983009808
        %v1084 = vunpack.c.0.s8 %v1083
        %v1085 = vlaneseq
        %v1086 = vshrl.u32 %v1085, 7
        %v1087 = vsub.s32 %v1084, %v1086
        %v1088 = vrot.slane %v1074, %v1087
        %v1089 = vcombine.high %v1081, %v1081
        %v1090 = vcombine.high %v1088, %v1088
        %v1091 = vcombine.high %v771, %v771
        %v1093 = vunpack.c.l.s4 1983009808
        %v1094 = vunpack.c.0.s8 %v1093
        %v1095 = vlaneseq
        %v1096 = vshrl.u32 %v1095, 7
        %v1097 = vsub.s32 %v1094, %v1096
        %v1098 = vrot.slane %v771, %v1097
        %v1100 = vunpack.c.l.s4 1983009808
        %v1101 = vunpack.c.0.s8 %v1100
        %v1102 = vlaneseq
        %v1103 = vshrl.u32 %v1102, 7
        %v1104 = vsub.s32 %v1101, %v1103
        %v1105 = vrot.slane %v1091, %v1104
        %v1106 = vcombine.high %v1098, %v1098
        %v1107 = vcombine.high %v1105, %v1105
        %v1108 = vcombine.high %v772, %v772
        %v1110 = vunpack.c.l.s4 1983009808
        %v1111 = vunpack.c.0.s8 %v1110
        %v1112 = vlaneseq
        %v1113 = vshrl.u32 %v1112, 7
        %v1114 = vsub.s32 %v1111, %v1113
        %v1115 = vrot.slane %v772, %v1114
        %v1117 = vunpack.c.l.s4 1983009808
        %v1118 = vunpack.c.0.s8 %v1117
        %v1119 = vlaneseq
        %v1120 = vshrl.u32 %v1119, 7
        %v1121 = vsub.s32 %v1118, %v1120
        %v1122 = vrot.slane %v1108, %v1121
        %v1123 = vcombine.high %v1115, %v1115
        %v1124 = vcombine.high %v1122, %v1122
        %v1125 = vcombine.high %v773, %v773
        %v1127 = vunpack.c.l.s4 1983009808
        %v1128 = vunpack.c.0.s8 %v1127
        %v1129 = vlaneseq
        %v1130 = vshrl.u32 %v1129, 7
        %v1131 = vsub.s32 %v1128, %v1130
        %v1132 = vrot.slane %v773, %v1131
        %v1134 = vunpack.c.l.s4 1983009808
        %v1135 = vunpack.c.0.s8 %v1134
        %v1136 = vlaneseq
        %v1137 = vshrl.u32 %v1136, 7
        %v1138 = vsub.s32 %v1135, %v1137
        %v1139 = vrot.slane %v1125, %v1138
        %v1140 = vcombine.high %v1132, %v1132
        %v1141 = vcombine.high %v1139, %v1139
        %v1142 = vcombine.high %v774, %v774
        %v1144 = vunpack.c.l.s4 1983009808
        %v1145 = vunpack.c.0.s8 %v1144
        %v1146 = vlaneseq
        %v1147 = vshrl.u32 %v1146, 7
        %v1148 = vsub.s32 %v1145, %v1147
        %v1149 = vrot.slane %v774, %v1148
        %v1151 = vunpack.c.l.s4 1983009808
        %v1152 = vunpack.c.0.s8 %v1151
        %v1153 = vlaneseq
        %v1154 = vshrl.u32 %v1153, 7
        %v1155 = vsub.s32 %v1152, %v1154
        %v1156 = vrot.slane %v1142, %v1155
        %v1157 = vcombine.high %v1149, %v1149
        %v1158 = vcombine.high %v1156, %v1156
        %v1159 = vcombine.high %v775, %v775
        %v1161 = vunpack.c.l.s4 1983009808
        %v1162 = vunpack.c.0.s8 %v1161
        %v1163 = vlaneseq
        %v1164 = vshrl.u32 %v1163, 7
        %v1165 = vsub.s32 %v1162, %v1164
        %v1166 = vrot.slane %v775, %v1165
        %v1168 = vunpack.c.l.s4 1983009808
        %v1169 = vunpack.c.0.s8 %v1168
        %v1170 = vlaneseq
        %v1171 = vshrl.u32 %v1170, 7
        %v1172 = vsub.s32 %v1169, %v1171
        %v1173 = vrot.slane %v1159, %v1172
        %v1174 = vcombine.high %v1166, %v1166
        %v1175 = vcombine.high %v1173, %v1173
        %v1176 = vcombine.high %v776, %v776
        %v1178 = vunpack.c.l.s4 1983009808
        %v1179 = vunpack.c.0.s8 %v1178
        %v1180 = vlaneseq
        %v1181 = vshrl.u32 %v1180, 7
        %v1182 = vsub.s32 %v1179, %v1181
        %v1183 = vrot.slane %v776, %v1182
        %v1185 = vunpack.c.l.s4 1983009808
        %v1186 = vunpack.c.0.s8 %v1185
        %v1187 = vlaneseq
        %v1188 = vshrl.u32 %v1187, 7
        %v1189 = vsub.s32 %v1186, %v1188
        %v1190 = vrot.slane %v1176, %v1189
        %v1191 = vcombine.high %v1183, %v1183
        %v1192 = vcombine.high %v1190, %v1190
        %v1193 = vcombine.high %v777, %v777
        %v1195 = vunpack.c.l.s4 1983009808
        %v1196 = vunpack.c.0.s8 %v1195
        %v1197 = vlaneseq
        %v1198 = vshrl.u32 %v1197, 7
        %v1199 = vsub.s32 %v1196, %v1198
        %v1200 = vrot.slane %v777, %v1199
        %v1202 = vunpack.c.l.s4 1983009808
        %v1203 = vunpack.c.0.s8 %v1202
        %v1204 = vlaneseq
        %v1205 = vshrl.u32 %v1204, 7
        %v1206 = vsub.s32 %v1203, %v1205
        %v1207 = vrot.slane %v1193, %v1206
        %v1208 = vcombine.high %v1200, %v1200
        %v1209 = vcombine.high %v1207, %v1207
        %v1210 = vcombine.high %v778, %v778
        %v1212 = vunpack.c.l.s4 1983009808
        %v1213 = vunpack.c.0.s8 %v1212
        %v1214 = vlaneseq
        %v1215 = vshrl.u32 %v1214, 7
        %v1216 = vsub.s32 %v1213, %v1215
        %v1217 = vrot.slane %v778, %v1216
        %v1219 = vunpack.c.l.s4 1983009808
        %v1220 = vunpack.c.0.s8 %v1219
        %v1221 = vlaneseq
        %v1222 = vshrl.u32 %v1221, 7
        %v1223 = vsub.s32 %v1220, %v1222
        %v1224 = vrot.slane %v1210, %v1223
        %v1225 = vcombine.high %v1217, %v1217
        %v1226 = vcombine.high %v1224, %v1224
        %v1227 = vcombine.high %v779, %v779
        %v1229 = vunpack.c.l.s4 1983009808
        %v1230 = vunpack.c.0.s8 %v1229
        %v1231 = vlaneseq
        %v1232 = vshrl.u32 %v1231, 7
        %v1233 = vsub.s32 %v1230, %v1232
        %v1234 = vrot.slane %v779, %v1233
        %v1236 = vunpack.c.l.s4 1983009808
        %v1237 = vunpack.c.0.s8 %v1236
        %v1238 = vlaneseq
        %v1239 = vshrl.u32 %v1238, 7
        %v1240 = vsub.s32 %v1237, %v1239
        %v1241 = vrot.slane %v1227, %v1240
        %v1242 = vcombine.high %v1234, %v1234
        %v1243 = vcombine.high %v1241, %v1241
        %v1244 = vcombine.high %v780, %v780
        %v1246 = vunpack.c.l.s4 1983009808
        %v1247 = vunpack.c.0.s8 %v1246
        %v1248 = vlaneseq
        %v1249 = vshrl.u32 %v1248, 7
        %v1250 = vsub.s32 %v1247, %v1249
        %v1251 = vrot.slane %v780, %v1250
        %v1253 = vunpack.c.l.s4 1983009808
        %v1254 = vunpack.c.0.s8 %v1253
        %v1255 = vlaneseq
        %v1256 = vshrl.u32 %v1255, 7
        %v1257 = vsub.s32 %v1254, %v1256
        %v1258 = vrot.slane %v1244, %v1257
        %v1259 = vcombine.high %v1251, %v1251
        %v1260 = vcombine.high %v1258, %v1258
        %v1261 = vcombine.high %v781, %v781
        %v1263 = vunpack.c.l.s4 1983009808
        %v1264 = vunpack.c.0.s8 %v1263
        %v1265 = vlaneseq
        %v1266 = vshrl.u32 %v1265, 7
        %v1267 = vsub.s32 %v1264, %v1266
        %v1268 = vrot.slane %v781, %v1267
        %v1270 = vunpack.c.l.s4 1983009808
        %v1271 = vunpack.c.0.s8 %v1270
        %v1272 = vlaneseq
        %v1273 = vshrl.u32 %v1272, 7
        %v1274 = vsub.s32 %v1271, %v1273
        %v1275 = vrot.slane %v1261, %v1274
        %v1276 = vcombine.high %v1268, %v1268
        %v1277 = vcombine.high %v1275, %v1275
        %v1278 = vcombine.high %v782, %v782
        %v1280 = vunpack.c.l.s4 1983009808
        %v1281 = vunpack.c.0.s8 %v1280
        %v1282 = vlaneseq
        %v1283 = vshrl.u32 %v1282, 7
        %v1284 = vsub.s32 %v1281, %v1283
        %v1285 = vrot.slane %v782, %v1284
        %v1287 = vunpack.c.l.s4 1983009808
        %v1288 = vunpack.c.0.s8 %v1287
        %v1289 = vlaneseq
        %v1290 = vshrl.u32 %v1289, 7
        %v1291 = vsub.s32 %v1288, %v1290
        %v1292 = vrot.slane %v1278, %v1291
        %v1293 = vcombine.high %v1285, %v1285
        %v1294 = vcombine.high %v1292, %v1292
        %v1295 = vcombine.high %v783, %v783
        %v1297 = vunpack.c.l.s4 1983009808
        %v1298 = vunpack.c.0.s8 %v1297
        %v1299 = vlaneseq
        %v1300 = vshrl.u32 %v1299, 7
        %v1301 = vsub.s32 %v1298, %v1300
        %v1302 = vrot.slane %v783, %v1301
        %v1304 = vunpack.c.l.s4 1983009808
        %v1305 = vunpack.c.0.s8 %v1304
        %v1306 = vlaneseq
        %v1307 = vshrl.u32 %v1306, 7
        %v1308 = vsub.s32 %v1305, %v1307
        %v1309 = vrot.slane %v1295, %v1308
        %v1310 = vcombine.high %v1302, %v1302
        %v1311 = vcombine.high %v1309, %v1309
        %v1312 = vcombine.high %v784, %v784
        %v1314 = vunpack.c.l.s4 1983009808
        %v1315 = vunpack.c.0.s8 %v1314
        %v1316 = vlaneseq
        %v1317 = vshrl.u32 %v1316, 7
        %v1318 = vsub.s32 %v1315, %v1317
        %v1319 = vrot.slane %v784, %v1318
        %v1321 = vunpack.c.l.s4 1983009808
        %v1322 = vunpack.c.0.s8 %v1321
        %v1323 = vlaneseq
        %v1324 = vshrl.u32 %v1323, 7
        %v1325 = vsub.s32 %v1322, %v1324
        %v1326 = vrot.slane %v1312, %v1325
        %v1327 = vcombine.high %v1319, %v1319
        %v1328 = vcombine.high %v1326, %v1326
        %v1329 = vcombine.high %v785, %v785
        %v1331 = vunpack.c.l.s4 1983009808
        %v1332 = vunpack.c.0.s8 %v1331
        %v1333 = vlaneseq
        %v1334 = vshrl.u32 %v1333, 7
        %v1335 = vsub.s32 %v1332, %v1334
        %v1336 = vrot.slane %v785, %v1335
        %v1338 = vunpack.c.l.s4 1983009808
        %v1339 = vunpack.c.0.s8 %v1338
        %v1340 = vlaneseq
        %v1341 = vshrl.u32 %v1340, 7
        %v1342 = vsub.s32 %v1339, %v1341
        %v1343 = vrot.slane %v1329, %v1342
        %v1344 = vcombine.high %v1336, %v1336
        %v1345 = vcombine.high %v1343, %v1343
        %v1346 = vcombine.high %v786, %v786
        %v1348 = vunpack.c.l.s4 1983009808
        %v1349 = vunpack.c.0.s8 %v1348
        %v1350 = vlaneseq
        %v1351 = vshrl.u32 %v1350, 7
        %v1352 = vsub.s32 %v1349, %v1351
        %v1353 = vrot.slane %v786, %v1352
        %v1355 = vunpack.c.l.s4 1983009808
        %v1356 = vunpack.c.0.s8 %v1355
        %v1357 = vlaneseq
        %v1358 = vshrl.u32 %v1357, 7
        %v1359 = vsub.s32 %v1356, %v1358
        %v1360 = vrot.slane %v1346, %v1359
        %v1361 = vcombine.high %v1353, %v1353
        %v1362 = vcombine.high %v1360, %v1360
        %vm1491 = vcmask 123904
        %v1492 = vsel %vm1491, %v826, 0.0
        %1493 = vadd.xlane.f32.xlu0 %v1492
        %v1494 = vpop.xlane.xlu0 %1493
        %v1495 = vsel %vm1491, %v834, 0.0
        %1496 = vadd.xlane.f32.xlu0 %v1495
        %v1497 = vpop.xlane.xlu0 %1496
        %v1498 = vsel %vm1491, %v833, 0.0
        %1499 = vadd.xlane.f32.xlu0 %v1498
        %v1500 = vpop.xlane.xlu0 %1499
        %v1501 = vsel %vm1491, %v835, 0.0
        %1502 = vadd.xlane.f32.xlu0 %v1501
        %v1503 = vpop.xlane.xlu0 %1502
        %v1504 = vsel %vm1491, %v843, 0.0
        %1505 = vadd.xlane.f32.xlu0 %v1504
        %v1506 = vpop.xlane.xlu0 %1505
        %v1507 = vsel %vm1491, %v851, 0.0
        %1508 = vadd.xlane.f32.xlu0 %v1507
        %v1509 = vpop.xlane.xlu0 %1508
        %v1510 = vsel %vm1491, %v850, 0.0
        %1511 = vadd.xlane.f32.xlu0 %v1510
        %v1512 = vpop.xlane.xlu0 %1511
        %v1513 = vsel %vm1491, %v852, 0.0
        %1514 = vadd.xlane.f32.xlu0 %v1513
        %v1515 = vpop.xlane.xlu0 %1514
        %v1516 = vsel %vm1491, %v860, 0.0
        %1517 = vadd.xlane.f32.xlu0 %v1516
        %v1518 = vpop.xlane.xlu0 %1517
        %v1519 = vsel %vm1491, %v868, 0.0
        %1520 = vadd.xlane.f32.xlu0 %v1519
        %v1521 = vpop.xlane.xlu0 %1520
        %v1522 = vsel %vm1491, %v867, 0.0
        %1523 = vadd.xlane.f32.xlu0 %v1522
        %v1524 = vpop.xlane.xlu0 %1523
        %v1525 = vsel %vm1491, %v869, 0.0
        %1526 = vadd.xlane.f32.xlu0 %v1525
        %v1527 = vpop.xlane.xlu0 %1526
        %v1528 = vsel %vm1491, %v877, 0.0
        %1529 = vadd.xlane.f32.xlu0 %v1528
        %v1530 = vpop.xlane.xlu0 %1529
        %v1531 = vsel %vm1491, %v885, 0.0
        %1532 = vadd.xlane.f32.xlu0 %v1531
        %v1533 = vpop.xlane.xlu0 %1532
        %v1534 = vsel %vm1491, %v884, 0.0
        %1535 = vadd.xlane.f32.xlu0 %v1534
        %v1536 = vpop.xlane.xlu0 %1535
        %v1537 = vsel %vm1491, %v886, 0.0
        %1538 = vadd.xlane.f32.xlu0 %v1537
        %v1539 = vpop.xlane.xlu0 %1538
        %v1540 = vsel %vm1491, %v894, 0.0
        %1541 = vadd.xlane.f32.xlu0 %v1540
        %v1542 = vpop.xlane.xlu0 %1541
        %v1543 = vsel %vm1491, %v902, 0.0
        %1544 = vadd.xlane.f32.xlu0 %v1543
        %v1545 = vpop.xlane.xlu0 %1544
        %v1546 = vsel %vm1491, %v901, 0.0
        %1547 = vadd.xlane.f32.xlu0 %v1546
        %v1548 = vpop.xlane.xlu0 %1547
        %v1549 = vsel %vm1491, %v903, 0.0
        %1550 = vadd.xlane.f32.xlu0 %v1549
        %v1551 = vpop.xlane.xlu0 %1550
        %v1552 = vsel %vm1491, %v911, 0.0
        %1553 = vadd.xlane.f32.xlu0 %v1552
        %v1554 = vpop.xlane.xlu0 %1553
        %v1555 = vsel %vm1491, %v919, 0.0
        %1556 = vadd.xlane.f32.xlu0 %v1555
        %v1557 = vpop.xlane.xlu0 %1556
        %v1558 = vsel %vm1491, %v918, 0.0
        %1559 = vadd.xlane.f32.xlu0 %v1558
        %v1560 = vpop.xlane.xlu0 %1559
        %v1561 = vsel %vm1491, %v920, 0.0
        %1562 = vadd.xlane.f32.xlu0 %v1561
        %v1563 = vpop.xlane.xlu0 %1562
        %v1564 = vsel %vm1491, %v928, 0.0
        %1565 = vadd.xlane.f32.xlu0 %v1564
        %v1566 = vpop.xlane.xlu0 %1565
        %v1567 = vsel %vm1491, %v936, 0.0
        %1568 = vadd.xlane.f32.xlu0 %v1567
        %v1569 = vpop.xlane.xlu0 %1568
        %v1570 = vsel %vm1491, %v935, 0.0
        %1571 = vadd.xlane.f32.xlu0 %v1570
        %v1572 = vpop.xlane.xlu0 %1571
        %v1573 = vsel %vm1491, %v937, 0.0
        %1574 = vadd.xlane.f32.xlu0 %v1573
        %v1575 = vpop.xlane.xlu0 %1574
        %v1576 = vsel %vm1491, %v945, 0.0
        %1577 = vadd.xlane.f32.xlu0 %v1576
        %v1578 = vpop.xlane.xlu0 %1577
        %v1579 = vsel %vm1491, %v953, 0.0
        %1580 = vadd.xlane.f32.xlu0 %v1579
        %v1581 = vpop.xlane.xlu0 %1580
        %v1582 = vsel %vm1491, %v952, 0.0
        %1583 = vadd.xlane.f32.xlu0 %v1582
        %v1584 = vpop.xlane.xlu0 %1583
        %v1585 = vsel %vm1491, %v954, 0.0
        %1586 = vadd.xlane.f32.xlu0 %v1585
        %v1587 = vpop.xlane.xlu0 %1586
        %v1588 = vsel %vm1491, %v962, 0.0
        %1589 = vadd.xlane.f32.xlu0 %v1588
        %v1590 = vpop.xlane.xlu0 %1589
        %v1591 = vsel %vm1491, %v970, 0.0
        %1592 = vadd.xlane.f32.xlu0 %v1591
        %v1593 = vpop.xlane.xlu0 %1592
        %v1594 = vsel %vm1491, %v969, 0.0
        %1595 = vadd.xlane.f32.xlu0 %v1594
        %v1596 = vpop.xlane.xlu0 %1595
        %v1597 = vsel %vm1491, %v971, 0.0
        %1598 = vadd.xlane.f32.xlu0 %v1597
        %v1599 = vpop.xlane.xlu0 %1598
        %v1600 = vsel %vm1491, %v979, 0.0
        %1601 = vadd.xlane.f32.xlu0 %v1600
        %v1602 = vpop.xlane.xlu0 %1601
        %v1603 = vsel %vm1491, %v987, 0.0
        %1604 = vadd.xlane.f32.xlu0 %v1603
        %v1605 = vpop.xlane.xlu0 %1604
        %v1606 = vsel %vm1491, %v986, 0.0
        %1607 = vadd.xlane.f32.xlu0 %v1606
        %v1608 = vpop.xlane.xlu0 %1607
        %v1609 = vsel %vm1491, %v988, 0.0
        %1610 = vadd.xlane.f32.xlu0 %v1609
        %v1611 = vpop.xlane.xlu0 %1610
        %v1612 = vsel %vm1491, %v996, 0.0
        %1613 = vadd.xlane.f32.xlu0 %v1612
        %v1614 = vpop.xlane.xlu0 %1613
        %v1615 = vsel %vm1491, %v1004, 0.0
        %1616 = vadd.xlane.f32.xlu0 %v1615
        %v1617 = vpop.xlane.xlu0 %1616
        %v1618 = vsel %vm1491, %v1003, 0.0
        %1619 = vadd.xlane.f32.xlu0 %v1618
        %v1620 = vpop.xlane.xlu0 %1619
        %v1621 = vsel %vm1491, %v1005, 0.0
        %1622 = vadd.xlane.f32.xlu0 %v1621
        %v1623 = vpop.xlane.xlu0 %1622
        %v1624 = vsel %vm1491, %v1013, 0.0
        %1625 = vadd.xlane.f32.xlu0 %v1624
        %v1626 = vpop.xlane.xlu0 %1625
        %v1627 = vsel %vm1491, %v1021, 0.0
        %1628 = vadd.xlane.f32.xlu0 %v1627
        %v1629 = vpop.xlane.xlu0 %1628
        %v1630 = vsel %vm1491, %v1020, 0.0
        %1631 = vadd.xlane.f32.xlu0 %v1630
        %v1632 = vpop.xlane.xlu0 %1631
        %v1633 = vsel %vm1491, %v1022, 0.0
        %1634 = vadd.xlane.f32.xlu0 %v1633
        %v1635 = vpop.xlane.xlu0 %1634
        %v1636 = vsel %vm1491, %v1030, 0.0
        %1637 = vadd.xlane.f32.xlu0 %v1636
        %v1638 = vpop.xlane.xlu0 %1637
        %v1639 = vsel %vm1491, %v1038, 0.0
        %1640 = vadd.xlane.f32.xlu0 %v1639
        %v1641 = vpop.xlane.xlu0 %1640
        %v1642 = vsel %vm1491, %v1037, 0.0
        %1643 = vadd.xlane.f32.xlu0 %v1642
        %v1644 = vpop.xlane.xlu0 %1643
        %v1645 = vsel %vm1491, %v1039, 0.0
        %1646 = vadd.xlane.f32.xlu0 %v1645
        %v1647 = vpop.xlane.xlu0 %1646
        %v1648 = vsel %vm1491, %v1047, 0.0
        %1649 = vadd.xlane.f32.xlu0 %v1648
        %v1650 = vpop.xlane.xlu0 %1649
        %v1651 = vsel %vm1491, %v1055, 0.0
        %1652 = vadd.xlane.f32.xlu0 %v1651
        %v1653 = vpop.xlane.xlu0 %1652
        %v1654 = vsel %vm1491, %v1054, 0.0
        %1655 = vadd.xlane.f32.xlu0 %v1654
        %v1656 = vpop.xlane.xlu0 %1655
        %v1657 = vsel %vm1491, %v1056, 0.0
        %1658 = vadd.xlane.f32.xlu0 %v1657
        %v1659 = vpop.xlane.xlu0 %1658
        %v1660 = vsel %vm1491, %v1064, 0.0
        %1661 = vadd.xlane.f32.xlu0 %v1660
        %v1662 = vpop.xlane.xlu0 %1661
        %v1663 = vsel %vm1491, %v1072, 0.0
        %1664 = vadd.xlane.f32.xlu0 %v1663
        %v1665 = vpop.xlane.xlu0 %1664
        %v1666 = vsel %vm1491, %v1071, 0.0
        %1667 = vadd.xlane.f32.xlu0 %v1666
        %v1668 = vpop.xlane.xlu0 %1667
        %v1669 = vsel %vm1491, %v1073, 0.0
        %1670 = vadd.xlane.f32.xlu0 %v1669
        %v1671 = vpop.xlane.xlu0 %1670
        %v1672 = vsel %vm1491, %v1081, 0.0
        %1673 = vadd.xlane.f32.xlu0 %v1672
        %v1674 = vpop.xlane.xlu0 %1673
        %v1675 = vsel %vm1491, %v1089, 0.0
        %1676 = vadd.xlane.f32.xlu0 %v1675
        %v1677 = vpop.xlane.xlu0 %1676
        %v1678 = vsel %vm1491, %v1088, 0.0
        %1679 = vadd.xlane.f32.xlu0 %v1678
        %v1680 = vpop.xlane.xlu0 %1679
        %v1681 = vsel %vm1491, %v1090, 0.0
        %1682 = vadd.xlane.f32.xlu0 %v1681
        %v1683 = vpop.xlane.xlu0 %1682
        %v1684 = vsel %vm1491, %v1098, 0.0
        %1685 = vadd.xlane.f32.xlu0 %v1684
        %v1686 = vpop.xlane.xlu0 %1685
        %v1687 = vsel %vm1491, %v1106, 0.0
        %1688 = vadd.xlane.f32.xlu0 %v1687
        %v1689 = vpop.xlane.xlu0 %1688
        %v1690 = vsel %vm1491, %v1105, 0.0
        %1691 = vadd.xlane.f32.xlu0 %v1690
        %v1692 = vpop.xlane.xlu0 %1691
        %v1693 = vsel %vm1491, %v1107, 0.0
        %1694 = vadd.xlane.f32.xlu0 %v1693
        %v1695 = vpop.xlane.xlu0 %1694
        %v1696 = vsel %vm1491, %v1115, 0.0
        %1697 = vadd.xlane.f32.xlu0 %v1696
        %v1698 = vpop.xlane.xlu0 %1697
        %v1699 = vsel %vm1491, %v1123, 0.0
        %1700 = vadd.xlane.f32.xlu0 %v1699
        %v1701 = vpop.xlane.xlu0 %1700
        %v1702 = vsel %vm1491, %v1122, 0.0
        %1703 = vadd.xlane.f32.xlu0 %v1702
        %v1704 = vpop.xlane.xlu0 %1703
        %v1705 = vsel %vm1491, %v1124, 0.0
        %1706 = vadd.xlane.f32.xlu0 %v1705
        %v1707 = vpop.xlane.xlu0 %1706
        %v1708 = vsel %vm1491, %v1132, 0.0
        %1709 = vadd.xlane.f32.xlu0 %v1708
        %v1710 = vpop.xlane.xlu0 %1709
        %v1711 = vsel %vm1491, %v1140, 0.0
        %1712 = vadd.xlane.f32.xlu0 %v1711
        %v1713 = vpop.xlane.xlu0 %1712
        %v1714 = vsel %vm1491, %v1139, 0.0
        %1715 = vadd.xlane.f32.xlu0 %v1714
        %v1716 = vpop.xlane.xlu0 %1715
        %v1717 = vsel %vm1491, %v1141, 0.0
        %1718 = vadd.xlane.f32.xlu0 %v1717
        %v1719 = vpop.xlane.xlu0 %1718
        %v1720 = vsel %vm1491, %v1149, 0.0
        %1721 = vadd.xlane.f32.xlu0 %v1720
        %v1722 = vpop.xlane.xlu0 %1721
        %v1723 = vsel %vm1491, %v1157, 0.0
        %1724 = vadd.xlane.f32.xlu0 %v1723
        %v1725 = vpop.xlane.xlu0 %1724
        %v1726 = vsel %vm1491, %v1156, 0.0
        %1727 = vadd.xlane.f32.xlu0 %v1726
        %v1728 = vpop.xlane.xlu0 %1727
        %v1729 = vsel %vm1491, %v1158, 0.0
        %1730 = vadd.xlane.f32.xlu0 %v1729
        %v1731 = vpop.xlane.xlu0 %1730
        %v1732 = vsel %vm1491, %v1166, 0.0
        %1733 = vadd.xlane.f32.xlu0 %v1732
        %v1734 = vpop.xlane.xlu0 %1733
        %v1735 = vsel %vm1491, %v1174, 0.0
        %1736 = vadd.xlane.f32.xlu0 %v1735
        %v1737 = vpop.xlane.xlu0 %1736
        %v1738 = vsel %vm1491, %v1173, 0.0
        %1739 = vadd.xlane.f32.xlu0 %v1738
        %v1740 = vpop.xlane.xlu0 %1739
        %v1741 = vsel %vm1491, %v1175, 0.0
        %1742 = vadd.xlane.f32.xlu0 %v1741
        %v1743 = vpop.xlane.xlu0 %1742
        %v1744 = vsel %vm1491, %v1183, 0.0
        %1745 = vadd.xlane.f32.xlu0 %v1744
        %v1746 = vpop.xlane.xlu0 %1745
        %v1747 = vsel %vm1491, %v1191, 0.0
        %1748 = vadd.xlane.f32.xlu0 %v1747
        %v1749 = vpop.xlane.xlu0 %1748
        %v1750 = vsel %vm1491, %v1190, 0.0
        %1751 = vadd.xlane.f32.xlu0 %v1750
        %v1752 = vpop.xlane.xlu0 %1751
        %v1753 = vsel %vm1491, %v1192, 0.0
        %1754 = vadd.xlane.f32.xlu0 %v1753
        %v1755 = vpop.xlane.xlu0 %1754
        %v1756 = vsel %vm1491, %v1200, 0.0
        %1757 = vadd.xlane.f32.xlu0 %v1756
        %v1758 = vpop.xlane.xlu0 %1757
        %v1759 = vsel %vm1491, %v1208, 0.0
        %1760 = vadd.xlane.f32.xlu0 %v1759
        %v1761 = vpop.xlane.xlu0 %1760
        %v1762 = vsel %vm1491, %v1207, 0.0
        %1763 = vadd.xlane.f32.xlu0 %v1762
        %v1764 = vpop.xlane.xlu0 %1763
        %v1765 = vsel %vm1491, %v1209, 0.0
        %1766 = vadd.xlane.f32.xlu0 %v1765
        %v1767 = vpop.xlane.xlu0 %1766
        %v1768 = vsel %vm1491, %v1217, 0.0
        %1769 = vadd.xlane.f32.xlu0 %v1768
        %v1770 = vpop.xlane.xlu0 %1769
        %v1771 = vsel %vm1491, %v1225, 0.0
        %1772 = vadd.xlane.f32.xlu0 %v1771
        %v1773 = vpop.xlane.xlu0 %1772
        %v1774 = vsel %vm1491, %v1224, 0.0
        %1775 = vadd.xlane.f32.xlu0 %v1774
        %v1776 = vpop.xlane.xlu0 %1775
        %v1777 = vsel %vm1491, %v1226, 0.0
        %1778 = vadd.xlane.f32.xlu0 %v1777
        %v1779 = vpop.xlane.xlu0 %1778
        %v1780 = vsel %vm1491, %v1234, 0.0
        %1781 = vadd.xlane.f32.xlu0 %v1780
        %v1782 = vpop.xlane.xlu0 %1781
        %v1783 = vsel %vm1491, %v1242, 0.0
        %1784 = vadd.xlane.f32.xlu0 %v1783
        %v1785 = vpop.xlane.xlu0 %1784
        %v1786 = vsel %vm1491, %v1241, 0.0
        %1787 = vadd.xlane.f32.xlu0 %v1786
        %v1788 = vpop.xlane.xlu0 %1787
        %v1789 = vsel %vm1491, %v1243, 0.0
        %1790 = vadd.xlane.f32.xlu0 %v1789
        %v1791 = vpop.xlane.xlu0 %1790
        %v1792 = vsel %vm1491, %v1251, 0.0
        %1793 = vadd.xlane.f32.xlu0 %v1792
        %v1794 = vpop.xlane.xlu0 %1793
        %v1795 = vsel %vm1491, %v1259, 0.0
        %1796 = vadd.xlane.f32.xlu0 %v1795
        %v1797 = vpop.xlane.xlu0 %1796
        %v1798 = vsel %vm1491, %v1258, 0.0
        %1799 = vadd.xlane.f32.xlu0 %v1798
        %v1800 = vpop.xlane.xlu0 %1799
        %v1801 = vsel %vm1491, %v1260, 0.0
        %1802 = vadd.xlane.f32.xlu0 %v1801
        %v1803 = vpop.xlane.xlu0 %1802
        %v1804 = vsel %vm1491, %v1268, 0.0
        %1805 = vadd.xlane.f32.xlu0 %v1804
        %v1806 = vpop.xlane.xlu0 %1805
        %v1807 = vsel %vm1491, %v1276, 0.0
        %1808 = vadd.xlane.f32.xlu0 %v1807
        %v1809 = vpop.xlane.xlu0 %1808
        %v1810 = vsel %vm1491, %v1275, 0.0
        %1811 = vadd.xlane.f32.xlu0 %v1810
        %v1812 = vpop.xlane.xlu0 %1811
        %v1813 = vsel %vm1491, %v1277, 0.0
        %1814 = vadd.xlane.f32.xlu0 %v1813
        %v1815 = vpop.xlane.xlu0 %1814
        %v1816 = vsel %vm1491, %v1285, 0.0
        %1817 = vadd.xlane.f32.xlu0 %v1816
        %v1818 = vpop.xlane.xlu0 %1817
        %v1819 = vsel %vm1491, %v1293, 0.0
        %1820 = vadd.xlane.f32.xlu0 %v1819
        %v1821 = vpop.xlane.xlu0 %1820
        %v1822 = vsel %vm1491, %v1292, 0.0
        %1823 = vadd.xlane.f32.xlu0 %v1822
        %v1824 = vpop.xlane.xlu0 %1823
        %v1825 = vsel %vm1491, %v1294, 0.0
        %1826 = vadd.xlane.f32.xlu0 %v1825
        %v1827 = vpop.xlane.xlu0 %1826
        %v1828 = vsel %vm1491, %v1302, 0.0
        %1829 = vadd.xlane.f32.xlu0 %v1828
        %v1830 = vpop.xlane.xlu0 %1829
        %v1831 = vsel %vm1491, %v1310, 0.0
        %1832 = vadd.xlane.f32.xlu0 %v1831
        %v1833 = vpop.xlane.xlu0 %1832
        %v1834 = vsel %vm1491, %v1309, 0.0
        %1835 = vadd.xlane.f32.xlu0 %v1834
        %v1836 = vpop.xlane.xlu0 %1835
        %v1837 = vsel %vm1491, %v1311, 0.0
        %1838 = vadd.xlane.f32.xlu0 %v1837
        %v1839 = vpop.xlane.xlu0 %1838
        %v1840 = vsel %vm1491, %v1319, 0.0
        %1841 = vadd.xlane.f32.xlu0 %v1840
        %v1842 = vpop.xlane.xlu0 %1841
        %v1843 = vsel %vm1491, %v1327, 0.0
        %1844 = vadd.xlane.f32.xlu0 %v1843
        %v1845 = vpop.xlane.xlu0 %1844
        %v1846 = vsel %vm1491, %v1326, 0.0
        %1847 = vadd.xlane.f32.xlu0 %v1846
        %v1848 = vpop.xlane.xlu0 %1847
        %v1849 = vsel %vm1491, %v1328, 0.0
        %1850 = vadd.xlane.f32.xlu0 %v1849
        %v1851 = vpop.xlane.xlu0 %1850
        %v1852 = vsel %vm1491, %v1336, 0.0
        %1853 = vadd.xlane.f32.xlu0 %v1852
        %v1854 = vpop.xlane.xlu0 %1853
        %v1855 = vsel %vm1491, %v1344, 0.0
        %1856 = vadd.xlane.f32.xlu0 %v1855
        %v1857 = vpop.xlane.xlu0 %1856
        %v1858 = vsel %vm1491, %v1343, 0.0
        %1859 = vadd.xlane.f32.xlu0 %v1858
        %v1860 = vpop.xlane.xlu0 %1859
        %v1861 = vsel %vm1491, %v1345, 0.0
        %1862 = vadd.xlane.f32.xlu0 %v1861
        %v1863 = vpop.xlane.xlu0 %1862
        %v1864 = vsel %vm1491, %v1353, 0.0
        %1865 = vadd.xlane.f32.xlu0 %v1864
        %v1866 = vpop.xlane.xlu0 %1865
        %v1867 = vsel %vm1491, %v1361, 0.0
        %1868 = vadd.xlane.f32.xlu0 %v1867
        %v1869 = vpop.xlane.xlu0 %1868
        %v1870 = vsel %vm1491, %v1360, 0.0
        %1871 = vadd.xlane.f32.xlu0 %v1870
        %v1872 = vpop.xlane.xlu0 %1871
        %v1873 = vsel %vm1491, %v1362, 0.0
        %1874 = vadd.xlane.f32.xlu0 %v1873
        %v1875 = vpop.xlane.xlu0 %1874
        %v1876 = vlaneseq
        %v1877 = vshrl.u32 %v1876, 7
        %v1878 = vlaneseq
        %v1879 = vand.u32 %v1878, 127
        %vm1880 = vcmp.eq.s32.totalorder %v1877, %v1879
        %v1881 = vsel %vm1880, 1, 0
        %v1882 = vcvt.s32.f32 %v1881
        %v2011 = vlaneseq
        %v2012 = vshrl.u32 %v2011, 7
        %v2013 = vsub.s32 %v1879, %v2012
        %v2014 = vrot.slane %v1494, %v2013
        %v2015 = vlaneseq
        %v2016 = vshrl.u32 %v2015, 7
        %v2017 = vsub.s32 %v1879, %v2016
        %v2018 = vrot.slane %v1497, %v2017
        %v2019 = vlaneseq
        %v2020 = vshrl.u32 %v2019, 7
        %v2021 = vsub.s32 %v1879, %v2020
        %v2022 = vrot.slane %v1500, %v2021
        %v2023 = vlaneseq
        %v2024 = vshrl.u32 %v2023, 7
        %v2025 = vsub.s32 %v1879, %v2024
        %v2026 = vrot.slane %v1503, %v2025
        %v2027 = vlaneseq
        %v2028 = vshrl.u32 %v2027, 7
        %v2029 = vsub.s32 %v1879, %v2028
        %v2030 = vrot.slane %v1506, %v2029
        %v2031 = vlaneseq
        %v2032 = vshrl.u32 %v2031, 7
        %v2033 = vsub.s32 %v1879, %v2032
        %v2034 = vrot.slane %v1509, %v2033
        %v2035 = vlaneseq
        %v2036 = vshrl.u32 %v2035, 7
        %v2037 = vsub.s32 %v1879, %v2036
        %v2038 = vrot.slane %v1512, %v2037
        %v2039 = vlaneseq
        %v2040 = vshrl.u32 %v2039, 7
        %v2041 = vsub.s32 %v1879, %v2040
        %v2042 = vrot.slane %v1515, %v2041
        %v2043 = vlaneseq
        %v2044 = vshrl.u32 %v2043, 7
        %v2045 = vsub.s32 %v1879, %v2044
        %v2046 = vrot.slane %v1518, %v2045
        %v2047 = vlaneseq
        %v2048 = vshrl.u32 %v2047, 7
        %v2049 = vsub.s32 %v1879, %v2048
        %v2050 = vrot.slane %v1521, %v2049
        %v2051 = vlaneseq
        %v2052 = vshrl.u32 %v2051, 7
        %v2053 = vsub.s32 %v1879, %v2052
        %v2054 = vrot.slane %v1524, %v2053
        %v2055 = vlaneseq
        %v2056 = vshrl.u32 %v2055, 7
        %v2057 = vsub.s32 %v1879, %v2056
        %v2058 = vrot.slane %v1527, %v2057
        %v2059 = vlaneseq
        %v2060 = vshrl.u32 %v2059, 7
        %v2061 = vsub.s32 %v1879, %v2060
        %v2062 = vrot.slane %v1530, %v2061
        %v2063 = vlaneseq
        %v2064 = vshrl.u32 %v2063, 7
        %v2065 = vsub.s32 %v1879, %v2064
        %v2066 = vrot.slane %v1533, %v2065
        %v2067 = vlaneseq
        %v2068 = vshrl.u32 %v2067, 7
        %v2069 = vsub.s32 %v1879, %v2068
        %v2070 = vrot.slane %v1536, %v2069
        %v2071 = vlaneseq
        %v2072 = vshrl.u32 %v2071, 7
        %v2073 = vsub.s32 %v1879, %v2072
        %v2074 = vrot.slane %v1539, %v2073
        %v2075 = vlaneseq
        %v2076 = vshrl.u32 %v2075, 7
        %v2077 = vsub.s32 %v1879, %v2076
        %v2078 = vrot.slane %v1542, %v2077
        %v2079 = vlaneseq
        %v2080 = vshrl.u32 %v2079, 7
        %v2081 = vsub.s32 %v1879, %v2080
        %v2082 = vrot.slane %v1545, %v2081
        %v2083 = vlaneseq
        %v2084 = vshrl.u32 %v2083, 7
        %v2085 = vsub.s32 %v1879, %v2084
        %v2086 = vrot.slane %v1548, %v2085
        %v2087 = vlaneseq
        %v2088 = vshrl.u32 %v2087, 7
        %v2089 = vsub.s32 %v1879, %v2088
        %v2090 = vrot.slane %v1551, %v2089
        %v2091 = vlaneseq
        %v2092 = vshrl.u32 %v2091, 7
        %v2093 = vsub.s32 %v1879, %v2092
        %v2094 = vrot.slane %v1554, %v2093
        %v2095 = vlaneseq
        %v2096 = vshrl.u32 %v2095, 7
        %v2097 = vsub.s32 %v1879, %v2096
        %v2098 = vrot.slane %v1557, %v2097
        %v2099 = vlaneseq
        %v2100 = vshrl.u32 %v2099, 7
        %v2101 = vsub.s32 %v1879, %v2100
        %v2102 = vrot.slane %v1560, %v2101
        %v2103 = vlaneseq
        %v2104 = vshrl.u32 %v2103, 7
        %v2105 = vsub.s32 %v1879, %v2104
        %v2106 = vrot.slane %v1563, %v2105
        %v2107 = vlaneseq
        %v2108 = vshrl.u32 %v2107, 7
        %v2109 = vsub.s32 %v1879, %v2108
        %v2110 = vrot.slane %v1566, %v2109
        %v2111 = vlaneseq
        %v2112 = vshrl.u32 %v2111, 7
        %v2113 = vsub.s32 %v1879, %v2112
        %v2114 = vrot.slane %v1569, %v2113
        %v2115 = vlaneseq
        %v2116 = vshrl.u32 %v2115, 7
        %v2117 = vsub.s32 %v1879, %v2116
        %v2118 = vrot.slane %v1572, %v2117
        %v2119 = vlaneseq
        %v2120 = vshrl.u32 %v2119, 7
        %v2121 = vsub.s32 %v1879, %v2120
        %v2122 = vrot.slane %v1575, %v2121
        %v2123 = vlaneseq
        %v2124 = vshrl.u32 %v2123, 7
        %v2125 = vsub.s32 %v1879, %v2124
        %v2126 = vrot.slane %v1578, %v2125
        %v2127 = vlaneseq
        %v2128 = vshrl.u32 %v2127, 7
        %v2129 = vsub.s32 %v1879, %v2128
        %v2130 = vrot.slane %v1581, %v2129
        %v2131 = vlaneseq
        %v2132 = vshrl.u32 %v2131, 7
        %v2133 = vsub.s32 %v1879, %v2132
        %v2134 = vrot.slane %v1584, %v2133
        %v2135 = vlaneseq
        %v2136 = vshrl.u32 %v2135, 7
        %v2137 = vsub.s32 %v1879, %v2136
        %v2138 = vrot.slane %v1587, %v2137
        %v2139 = vlaneseq
        %v2140 = vshrl.u32 %v2139, 7
        %v2141 = vsub.s32 %v1879, %v2140
        %v2142 = vrot.slane %v1590, %v2141
        %v2143 = vlaneseq
        %v2144 = vshrl.u32 %v2143, 7
        %v2145 = vsub.s32 %v1879, %v2144
        %v2146 = vrot.slane %v1593, %v2145
        %v2147 = vlaneseq
        %v2148 = vshrl.u32 %v2147, 7
        %v2149 = vsub.s32 %v1879, %v2148
        %v2150 = vrot.slane %v1596, %v2149
        %v2151 = vlaneseq
        %v2152 = vshrl.u32 %v2151, 7
        %v2153 = vsub.s32 %v1879, %v2152
        %v2154 = vrot.slane %v1599, %v2153
        %v2155 = vlaneseq
        %v2156 = vshrl.u32 %v2155, 7
        %v2157 = vsub.s32 %v1879, %v2156
        %v2158 = vrot.slane %v1602, %v2157
        %v2159 = vlaneseq
        %v2160 = vshrl.u32 %v2159, 7
        %v2161 = vsub.s32 %v1879, %v2160
        %v2162 = vrot.slane %v1605, %v2161
        %v2163 = vlaneseq
        %v2164 = vshrl.u32 %v2163, 7
        %v2165 = vsub.s32 %v1879, %v2164
        %v2166 = vrot.slane %v1608, %v2165
        %v2167 = vlaneseq
        %v2168 = vshrl.u32 %v2167, 7
        %v2169 = vsub.s32 %v1879, %v2168
        %v2170 = vrot.slane %v1611, %v2169
        %v2171 = vlaneseq
        %v2172 = vshrl.u32 %v2171, 7
        %v2173 = vsub.s32 %v1879, %v2172
        %v2174 = vrot.slane %v1614, %v2173
        %v2175 = vlaneseq
        %v2176 = vshrl.u32 %v2175, 7
        %v2177 = vsub.s32 %v1879, %v2176
        %v2178 = vrot.slane %v1617, %v2177
        %v2179 = vlaneseq
        %v2180 = vshrl.u32 %v2179, 7
        %v2181 = vsub.s32 %v1879, %v2180
        %v2182 = vrot.slane %v1620, %v2181
        %v2183 = vlaneseq
        %v2184 = vshrl.u32 %v2183, 7
        %v2185 = vsub.s32 %v1879, %v2184
        %v2186 = vrot.slane %v1623, %v2185
        %v2187 = vlaneseq
        %v2188 = vshrl.u32 %v2187, 7
        %v2189 = vsub.s32 %v1879, %v2188
        %v2190 = vrot.slane %v1626, %v2189
        %v2191 = vlaneseq
        %v2192 = vshrl.u32 %v2191, 7
        %v2193 = vsub.s32 %v1879, %v2192
        %v2194 = vrot.slane %v1629, %v2193
        %v2195 = vlaneseq
        %v2196 = vshrl.u32 %v2195, 7
        %v2197 = vsub.s32 %v1879, %v2196
        %v2198 = vrot.slane %v1632, %v2197
        %v2199 = vlaneseq
        %v2200 = vshrl.u32 %v2199, 7
        %v2201 = vsub.s32 %v1879, %v2200
        %v2202 = vrot.slane %v1635, %v2201
        %v2203 = vlaneseq
        %v2204 = vshrl.u32 %v2203, 7
        %v2205 = vsub.s32 %v1879, %v2204
        %v2206 = vrot.slane %v1638, %v2205
        %v2207 = vlaneseq
        %v2208 = vshrl.u32 %v2207, 7
        %v2209 = vsub.s32 %v1879, %v2208
        %v2210 = vrot.slane %v1641, %v2209
        %v2211 = vlaneseq
        %v2212 = vshrl.u32 %v2211, 7
        %v2213 = vsub.s32 %v1879, %v2212
        %v2214 = vrot.slane %v1644, %v2213
        %v2215 = vlaneseq
        %v2216 = vshrl.u32 %v2215, 7
        %v2217 = vsub.s32 %v1879, %v2216
        %v2218 = vrot.slane %v1647, %v2217
        %v2219 = vlaneseq
        %v2220 = vshrl.u32 %v2219, 7
        %v2221 = vsub.s32 %v1879, %v2220
        %v2222 = vrot.slane %v1650, %v2221
        %v2223 = vlaneseq
        %v2224 = vshrl.u32 %v2223, 7
        %v2225 = vsub.s32 %v1879, %v2224
        %v2226 = vrot.slane %v1653, %v2225
        %v2227 = vlaneseq
        %v2228 = vshrl.u32 %v2227, 7
        %v2229 = vsub.s32 %v1879, %v2228
        %v2230 = vrot.slane %v1656, %v2229
        %v2231 = vlaneseq
        %v2232 = vshrl.u32 %v2231, 7
        %v2233 = vsub.s32 %v1879, %v2232
        %v2234 = vrot.slane %v1659, %v2233
        %v2235 = vlaneseq
        %v2236 = vshrl.u32 %v2235, 7
        %v2237 = vsub.s32 %v1879, %v2236
        %v2238 = vrot.slane %v1662, %v2237
        %v2239 = vlaneseq
        %v2240 = vshrl.u32 %v2239, 7
        %v2241 = vsub.s32 %v1879, %v2240
        %v2242 = vrot.slane %v1665, %v2241
        %v2243 = vlaneseq
        %v2244 = vshrl.u32 %v2243, 7
        %v2245 = vsub.s32 %v1879, %v2244
        %v2246 = vrot.slane %v1668, %v2245
        %v2247 = vlaneseq
        %v2248 = vshrl.u32 %v2247, 7
        %v2249 = vsub.s32 %v1879, %v2248
        %v2250 = vrot.slane %v1671, %v2249
        %v2251 = vlaneseq
        %v2252 = vshrl.u32 %v2251, 7
        %v2253 = vsub.s32 %v1879, %v2252
        %v2254 = vrot.slane %v1674, %v2253
        %v2255 = vlaneseq
        %v2256 = vshrl.u32 %v2255, 7
        %v2257 = vsub.s32 %v1879, %v2256
        %v2258 = vrot.slane %v1677, %v2257
        %v2259 = vlaneseq
        %v2260 = vshrl.u32 %v2259, 7
        %v2261 = vsub.s32 %v1879, %v2260
        %v2262 = vrot.slane %v1680, %v2261
        %v2263 = vlaneseq
        %v2264 = vshrl.u32 %v2263, 7
        %v2265 = vsub.s32 %v1879, %v2264
        %v2266 = vrot.slane %v1683, %v2265
        %v2267 = vlaneseq
        %v2268 = vshrl.u32 %v2267, 7
        %v2269 = vsub.s32 %v1879, %v2268
        %v2270 = vrot.slane %v1686, %v2269
        %v2271 = vlaneseq
        %v2272 = vshrl.u32 %v2271, 7
        %v2273 = vsub.s32 %v1879, %v2272
        %v2274 = vrot.slane %v1689, %v2273
        %v2275 = vlaneseq
        %v2276 = vshrl.u32 %v2275, 7
        %v2277 = vsub.s32 %v1879, %v2276
        %v2278 = vrot.slane %v1692, %v2277
        %v2279 = vlaneseq
        %v2280 = vshrl.u32 %v2279, 7
        %v2281 = vsub.s32 %v1879, %v2280
        %v2282 = vrot.slane %v1695, %v2281
        %v2283 = vlaneseq
        %v2284 = vshrl.u32 %v2283, 7
        %v2285 = vsub.s32 %v1879, %v2284
        %v2286 = vrot.slane %v1698, %v2285
        %v2287 = vlaneseq
        %v2288 = vshrl.u32 %v2287, 7
        %v2289 = vsub.s32 %v1879, %v2288
        %v2290 = vrot.slane %v1701, %v2289
        %v2291 = vlaneseq
        %v2292 = vshrl.u32 %v2291, 7
        %v2293 = vsub.s32 %v1879, %v2292
        %v2294 = vrot.slane %v1704, %v2293
        %v2295 = vlaneseq
        %v2296 = vshrl.u32 %v2295, 7
        %v2297 = vsub.s32 %v1879, %v2296
        %v2298 = vrot.slane %v1707, %v2297
        %v2299 = vlaneseq
        %v2300 = vshrl.u32 %v2299, 7
        %v2301 = vsub.s32 %v1879, %v2300
        %v2302 = vrot.slane %v1710, %v2301
        %v2303 = vlaneseq
        %v2304 = vshrl.u32 %v2303, 7
        %v2305 = vsub.s32 %v1879, %v2304
        %v2306 = vrot.slane %v1713, %v2305
        %v2307 = vlaneseq
        %v2308 = vshrl.u32 %v2307, 7
        %v2309 = vsub.s32 %v1879, %v2308
        %v2310 = vrot.slane %v1716, %v2309
        %v2311 = vlaneseq
        %v2312 = vshrl.u32 %v2311, 7
        %v2313 = vsub.s32 %v1879, %v2312
        %v2314 = vrot.slane %v1719, %v2313
        %v2315 = vlaneseq
        %v2316 = vshrl.u32 %v2315, 7
        %v2317 = vsub.s32 %v1879, %v2316
        %v2318 = vrot.slane %v1722, %v2317
        %v2319 = vlaneseq
        %v2320 = vshrl.u32 %v2319, 7
        %v2321 = vsub.s32 %v1879, %v2320
        %v2322 = vrot.slane %v1725, %v2321
        %v2323 = vlaneseq
        %v2324 = vshrl.u32 %v2323, 7
        %v2325 = vsub.s32 %v1879, %v2324
        %v2326 = vrot.slane %v1728, %v2325
        %v2327 = vlaneseq
        %v2328 = vshrl.u32 %v2327, 7
        %v2329 = vsub.s32 %v1879, %v2328
        %v2330 = vrot.slane %v1731, %v2329
        %v2331 = vlaneseq
        %v2332 = vshrl.u32 %v2331, 7
        %v2333 = vsub.s32 %v1879, %v2332
        %v2334 = vrot.slane %v1734, %v2333
        %v2335 = vlaneseq
        %v2336 = vshrl.u32 %v2335, 7
        %v2337 = vsub.s32 %v1879, %v2336
        %v2338 = vrot.slane %v1737, %v2337
        %v2339 = vlaneseq
        %v2340 = vshrl.u32 %v2339, 7
        %v2341 = vsub.s32 %v1879, %v2340
        %v2342 = vrot.slane %v1740, %v2341
        %v2343 = vlaneseq
        %v2344 = vshrl.u32 %v2343, 7
        %v2345 = vsub.s32 %v1879, %v2344
        %v2346 = vrot.slane %v1743, %v2345
        %v2347 = vlaneseq
        %v2348 = vshrl.u32 %v2347, 7
        %v2349 = vsub.s32 %v1879, %v2348
        %v2350 = vrot.slane %v1746, %v2349
        %v2351 = vlaneseq
        %v2352 = vshrl.u32 %v2351, 7
        %v2353 = vsub.s32 %v1879, %v2352
        %v2354 = vrot.slane %v1749, %v2353
        %v2355 = vlaneseq
        %v2356 = vshrl.u32 %v2355, 7
        %v2357 = vsub.s32 %v1879, %v2356
        %v2358 = vrot.slane %v1752, %v2357
        %v2359 = vlaneseq
        %v2360 = vshrl.u32 %v2359, 7
        %v2361 = vsub.s32 %v1879, %v2360
        %v2362 = vrot.slane %v1755, %v2361
        %v2363 = vlaneseq
        %v2364 = vshrl.u32 %v2363, 7
        %v2365 = vsub.s32 %v1879, %v2364
        %v2366 = vrot.slane %v1758, %v2365
        %v2367 = vlaneseq
        %v2368 = vshrl.u32 %v2367, 7
        %v2369 = vsub.s32 %v1879, %v2368
        %v2370 = vrot.slane %v1761, %v2369
        %v2371 = vlaneseq
        %v2372 = vshrl.u32 %v2371, 7
        %v2373 = vsub.s32 %v1879, %v2372
        %v2374 = vrot.slane %v1764, %v2373
        %v2375 = vlaneseq
        %v2376 = vshrl.u32 %v2375, 7
        %v2377 = vsub.s32 %v1879, %v2376
        %v2378 = vrot.slane %v1767, %v2377
        %v2379 = vlaneseq
        %v2380 = vshrl.u32 %v2379, 7
        %v2381 = vsub.s32 %v1879, %v2380
        %v2382 = vrot.slane %v1770, %v2381
        %v2383 = vlaneseq
        %v2384 = vshrl.u32 %v2383, 7
        %v2385 = vsub.s32 %v1879, %v2384
        %v2386 = vrot.slane %v1773, %v2385
        %v2387 = vlaneseq
        %v2388 = vshrl.u32 %v2387, 7
        %v2389 = vsub.s32 %v1879, %v2388
        %v2390 = vrot.slane %v1776, %v2389
        %v2391 = vlaneseq
        %v2392 = vshrl.u32 %v2391, 7
        %v2393 = vsub.s32 %v1879, %v2392
        %v2394 = vrot.slane %v1779, %v2393
        %v2395 = vlaneseq
        %v2396 = vshrl.u32 %v2395, 7
        %v2397 = vsub.s32 %v1879, %v2396
        %v2398 = vrot.slane %v1782, %v2397
        %v2399 = vlaneseq
        %v2400 = vshrl.u32 %v2399, 7
        %v2401 = vsub.s32 %v1879, %v2400
        %v2402 = vrot.slane %v1785, %v2401
        %v2403 = vlaneseq
        %v2404 = vshrl.u32 %v2403, 7
        %v2405 = vsub.s32 %v1879, %v2404
        %v2406 = vrot.slane %v1788, %v2405
        %v2407 = vlaneseq
        %v2408 = vshrl.u32 %v2407, 7
        %v2409 = vsub.s32 %v1879, %v2408
        %v2410 = vrot.slane %v1791, %v2409
        %v2411 = vlaneseq
        %v2412 = vshrl.u32 %v2411, 7
        %v2413 = vsub.s32 %v1879, %v2412
        %v2414 = vrot.slane %v1794, %v2413
        %v2415 = vlaneseq
        %v2416 = vshrl.u32 %v2415, 7
        %v2417 = vsub.s32 %v1879, %v2416
        %v2418 = vrot.slane %v1797, %v2417
        %v2419 = vlaneseq
        %v2420 = vshrl.u32 %v2419, 7
        %v2421 = vsub.s32 %v1879, %v2420
        %v2422 = vrot.slane %v1800, %v2421
        %v2423 = vlaneseq
        %v2424 = vshrl.u32 %v2423, 7
        %v2425 = vsub.s32 %v1879, %v2424
        %v2426 = vrot.slane %v1803, %v2425
        %v2427 = vlaneseq
        %v2428 = vshrl.u32 %v2427, 7
        %v2429 = vsub.s32 %v1879, %v2428
        %v2430 = vrot.slane %v1806, %v2429
        %v2431 = vlaneseq
        %v2432 = vshrl.u32 %v2431, 7
        %v2433 = vsub.s32 %v1879, %v2432
        %v2434 = vrot.slane %v1809, %v2433
        %v2435 = vlaneseq
        %v2436 = vshrl.u32 %v2435, 7
        %v2437 = vsub.s32 %v1879, %v2436
        %v2438 = vrot.slane %v1812, %v2437
        %v2439 = vlaneseq
        %v2440 = vshrl.u32 %v2439, 7
        %v2441 = vsub.s32 %v1879, %v2440
        %v2442 = vrot.slane %v1815, %v2441
        %v2443 = vlaneseq
        %v2444 = vshrl.u32 %v2443, 7
        %v2445 = vsub.s32 %v1879, %v2444
        %v2446 = vrot.slane %v1818, %v2445
        %v2447 = vlaneseq
        %v2448 = vshrl.u32 %v2447, 7
        %v2449 = vsub.s32 %v1879, %v2448
        %v2450 = vrot.slane %v1821, %v2449
        %v2451 = vlaneseq
        %v2452 = vshrl.u32 %v2451, 7
        %v2453 = vsub.s32 %v1879, %v2452
        %v2454 = vrot.slane %v1824, %v2453
        %v2455 = vlaneseq
        %v2456 = vshrl.u32 %v2455, 7
        %v2457 = vsub.s32 %v1879, %v2456
        %v2458 = vrot.slane %v1827, %v2457
        %v2459 = vlaneseq
        %v2460 = vshrl.u32 %v2459, 7
        %v2461 = vsub.s32 %v1879, %v2460
        %v2462 = vrot.slane %v1830, %v2461
        %v2463 = vlaneseq
        %v2464 = vshrl.u32 %v2463, 7
        %v2465 = vsub.s32 %v1879, %v2464
        %v2466 = vrot.slane %v1833, %v2465
        %v2467 = vlaneseq
        %v2468 = vshrl.u32 %v2467, 7
        %v2469 = vsub.s32 %v1879, %v2468
        %v2470 = vrot.slane %v1836, %v2469
        %v2471 = vlaneseq
        %v2472 = vshrl.u32 %v2471, 7
        %v2473 = vsub.s32 %v1879, %v2472
        %v2474 = vrot.slane %v1839, %v2473
        %v2475 = vlaneseq
        %v2476 = vshrl.u32 %v2475, 7
        %v2477 = vsub.s32 %v1879, %v2476
        %v2478 = vrot.slane %v1842, %v2477
        %v2479 = vlaneseq
        %v2480 = vshrl.u32 %v2479, 7
        %v2481 = vsub.s32 %v1879, %v2480
        %v2482 = vrot.slane %v1845, %v2481
        %v2483 = vlaneseq
        %v2484 = vshrl.u32 %v2483, 7
        %v2485 = vsub.s32 %v1879, %v2484
        %v2486 = vrot.slane %v1848, %v2485
        %v2487 = vlaneseq
        %v2488 = vshrl.u32 %v2487, 7
        %v2489 = vsub.s32 %v1879, %v2488
        %v2490 = vrot.slane %v1851, %v2489
        %v2491 = vlaneseq
        %v2492 = vshrl.u32 %v2491, 7
        %v2493 = vsub.s32 %v1879, %v2492
        %v2494 = vrot.slane %v1854, %v2493
        %v2495 = vlaneseq
        %v2496 = vshrl.u32 %v2495, 7
        %v2497 = vsub.s32 %v1879, %v2496
        %v2498 = vrot.slane %v1857, %v2497
        %v2499 = vlaneseq
        %v2500 = vshrl.u32 %v2499, 7
        %v2501 = vsub.s32 %v1879, %v2500
        %v2502 = vrot.slane %v1860, %v2501
        %v2503 = vlaneseq
        %v2504 = vshrl.u32 %v2503, 7
        %v2505 = vsub.s32 %v1879, %v2504
        %v2506 = vrot.slane %v1863, %v2505
        %v2507 = vlaneseq
        %v2508 = vshrl.u32 %v2507, 7
        %v2509 = vsub.s32 %v1879, %v2508
        %v2510 = vrot.slane %v1866, %v2509
        %v2511 = vlaneseq
        %v2512 = vshrl.u32 %v2511, 7
        %v2513 = vsub.s32 %v1879, %v2512
        %v2514 = vrot.slane %v1869, %v2513
        %v2515 = vlaneseq
        %v2516 = vshrl.u32 %v2515, 7
        %v2517 = vsub.s32 %v1879, %v2516
        %v2518 = vrot.slane %v1872, %v2517
        %v2519 = vlaneseq
        %v2520 = vshrl.u32 %v2519, 7
        %v2521 = vsub.s32 %v1879, %v2520
        %v2522 = vrot.slane %v1875, %v2521
        %vm2523 = vcmask 1041409
        %v2524 = vsel %vm2523, %v2018, %v2014
        %vm2525 = vcmask 1042434
        %v2526 = vsel %vm2525, %v2022, %v2524
        %vm2527 = vcmask 1043459
        %v2528 = vsel %vm2527, %v2026, %v2526
        %vm2529 = vcmask 1044484
        %v2530 = vsel %vm2529, %v2030, %v2528
        %vm2531 = vcmask 1045509
        %v2532 = vsel %vm2531, %v2034, %v2530
        %vm2533 = vcmask 1046534
        %v2534 = vsel %vm2533, %v2038, %v2532
        %vm2535 = vcmask 1047559
        %v2536 = vsel %vm2535, %v2042, %v2534
        %v2537 = vsel %vm2523, %v2050, %v2046
        %v2538 = vsel %vm2525, %v2054, %v2537
        %v2539 = vsel %vm2527, %v2058, %v2538
        %v2540 = vsel %vm2529, %v2062, %v2539
        %v2541 = vsel %vm2531, %v2066, %v2540
        %v2542 = vsel %vm2533, %v2070, %v2541
        %v2543 = vsel %vm2535, %v2074, %v2542
        %v2544 = vsel %vm2523, %v2082, %v2078
        %v2545 = vsel %vm2525, %v2086, %v2544
        %v2546 = vsel %vm2527, %v2090, %v2545
        %v2547 = vsel %vm2529, %v2094, %v2546
        %v2548 = vsel %vm2531, %v2098, %v2547
        %v2549 = vsel %vm2533, %v2102, %v2548
        %v2550 = vsel %vm2535, %v2106, %v2549
        %v2551 = vsel %vm2523, %v2114, %v2110
        %v2552 = vsel %vm2525, %v2118, %v2551
        %v2553 = vsel %vm2527, %v2122, %v2552
        %v2554 = vsel %vm2529, %v2126, %v2553
        %v2555 = vsel %vm2531, %v2130, %v2554
        %v2556 = vsel %vm2533, %v2134, %v2555
        %v2557 = vsel %vm2535, %v2138, %v2556
        %v2558 = vsel %vm2523, %v2146, %v2142
        %v2559 = vsel %vm2525, %v2150, %v2558
        %v2560 = vsel %vm2527, %v2154, %v2559
        %v2561 = vsel %vm2529, %v2158, %v2560
        %v2562 = vsel %vm2531, %v2162, %v2561
        %v2563 = vsel %vm2533, %v2166, %v2562
        %v2564 = vsel %vm2535, %v2170, %v2563
        %v2565 = vsel %vm2523, %v2178, %v2174
        %v2566 = vsel %vm2525, %v2182, %v2565
        %v2567 = vsel %vm2527, %v2186, %v2566
        %v2568 = vsel %vm2529, %v2190, %v2567
        %v2569 = vsel %vm2531, %v2194, %v2568
        %v2570 = vsel %vm2533, %v2198, %v2569
        %v2571 = vsel %vm2535, %v2202, %v2570
        %v2572 = vsel %vm2523, %v2210, %v2206
        %v2573 = vsel %vm2525, %v2214, %v2572
        %v2574 = vsel %vm2527, %v2218, %v2573
        %v2575 = vsel %vm2529, %v2222, %v2574
        %v2576 = vsel %vm2531, %v2226, %v2575
        %v2577 = vsel %vm2533, %v2230, %v2576
        %v2578 = vsel %vm2535, %v2234, %v2577
        %v2579 = vsel %vm2523, %v2242, %v2238
        %v2580 = vsel %vm2525, %v2246, %v2579
        %v2581 = vsel %vm2527, %v2250, %v2580
        %v2582 = vsel %vm2529, %v2254, %v2581
        %v2583 = vsel %vm2531, %v2258, %v2582
        %v2584 = vsel %vm2533, %v2262, %v2583
        %v2585 = vsel %vm2535, %v2266, %v2584
        %v2586 = vsel %vm2523, %v2274, %v2270
        %v2587 = vsel %vm2525, %v2278, %v2586
        %v2588 = vsel %vm2527, %v2282, %v2587
        %v2589 = vsel %vm2529, %v2286, %v2588
        %v2590 = vsel %vm2531, %v2290, %v2589
        %v2591 = vsel %vm2533, %v2294, %v2590
        %v2592 = vsel %vm2535, %v2298, %v2591
        %v2593 = vsel %vm2523, %v2306, %v2302
        %v2594 = vsel %vm2525, %v2310, %v2593
        %v2595 = vsel %vm2527, %v2314, %v2594
        %v2596 = vsel %vm2529, %v2318, %v2595
        %v2597 = vsel %vm2531, %v2322, %v2596
        %v2598 = vsel %vm2533, %v2326, %v2597
        %v2599 = vsel %vm2535, %v2330, %v2598
        %v2600 = vsel %vm2523, %v2338, %v2334
        %v2601 = vsel %vm2525, %v2342, %v2600
        %v2602 = vsel %vm2527, %v2346, %v2601
        %v2603 = vsel %vm2529, %v2350, %v2602
        %v2604 = vsel %vm2531, %v2354, %v2603
        %v2605 = vsel %vm2533, %v2358, %v2604
        %v2606 = vsel %vm2535, %v2362, %v2605
        %v2607 = vsel %vm2523, %v2370, %v2366
        %v2608 = vsel %vm2525, %v2374, %v2607
        %v2609 = vsel %vm2527, %v2378, %v2608
        %v2610 = vsel %vm2529, %v2382, %v2609
        %v2611 = vsel %vm2531, %v2386, %v2610
        %v2612 = vsel %vm2533, %v2390, %v2611
        %v2613 = vsel %vm2535, %v2394, %v2612
        %v2614 = vsel %vm2523, %v2402, %v2398
        %v2615 = vsel %vm2525, %v2406, %v2614
        %v2616 = vsel %vm2527, %v2410, %v2615
        %v2617 = vsel %vm2529, %v2414, %v2616
        %v2618 = vsel %vm2531, %v2418, %v2617
        %v2619 = vsel %vm2533, %v2422, %v2618
        %v2620 = vsel %vm2535, %v2426, %v2619
        %v2621 = vsel %vm2523, %v2434, %v2430
        %v2622 = vsel %vm2525, %v2438, %v2621
        %v2623 = vsel %vm2527, %v2442, %v2622
        %v2624 = vsel %vm2529, %v2446, %v2623
        %v2625 = vsel %vm2531, %v2450, %v2624
        %v2626 = vsel %vm2533, %v2454, %v2625
        %v2627 = vsel %vm2535, %v2458, %v2626
        %v2628 = vsel %vm2523, %v2466, %v2462
        %v2629 = vsel %vm2525, %v2470, %v2628
        %v2630 = vsel %vm2527, %v2474, %v2629
        %v2631 = vsel %vm2529, %v2478, %v2630
        %v2632 = vsel %vm2531, %v2482, %v2631
        %v2633 = vsel %vm2533, %v2486, %v2632
        %v2634 = vsel %vm2535, %v2490, %v2633
        %v2635 = vsel %vm2523, %v2498, %v2494
        %v2636 = vsel %vm2525, %v2502, %v2635
        %v2637 = vsel %vm2527, %v2506, %v2636
        %v2638 = vsel %vm2529, %v2510, %v2637
        %v2639 = vsel %vm2531, %v2514, %v2638
        %v2640 = vsel %vm2533, %v2518, %v2639
        %v2641 = vsel %vm2535, %v2522, %v2640
        %vm2642 = vcmask 15360
        %v2644 = vsel %vm2642, %v1882, 0
        %v2646 = vsel %vm2642, %v2536, 0
        %v2648 = vsel %vm2642, %v2543, 0
        %v2650 = vsel %vm2642, %v2550, 0
        %v2652 = vsel %vm2642, %v2557, 0
        %v2654 = vsel %vm2642, %v2564, 0
        %v2656 = vsel %vm2642, %v2571, 0
        %v2658 = vsel %vm2642, %v2578, 0
        %v2660 = vsel %vm2642, %v2585, 0
        %v2662 = vsel %vm2642, %v2592, 0
        %v2664 = vsel %vm2642, %v2599, 0
        %v2666 = vsel %vm2642, %v2606, 0
        %v2668 = vsel %vm2642, %v2613, 0
        %v2670 = vsel %vm2642, %v2620, 0
        %v2672 = vsel %vm2642, %v2627, 0
        %v2674 = vsel %vm2642, %v2634, 0
        %v2676 = vsel %vm2642, %v2641, 0
        %2678 = vmatprep.subr.mxu0 0.0
        %2679 = vmatpush1.xpose.msra.mxu0 %v2646
        %2680 = vmatprep.subr.mxu0 0.0
        %2681 = vmatpush1.xpose.msra.mxu0 %v2648
        %2682 = vmatprep.subr.mxu0 0.0
        %2683 = vmatpush1.xpose.msra.mxu0 %v2650
        %2684 = vmatprep.subr.mxu0 0.0
        %2685 = vmatpush1.xpose.msra.mxu0 %v2652
        %2686 = vmatprep.subr.mxu0 0.0
        %2687 = vmatpush1.xpose.msra.mxu0 %v2654
        %2688 = vmatprep.subr.mxu0 0.0
        %2689 = vmatpush1.xpose.msra.mxu0 %v2656
        %2690 = vmatprep.subr.mxu0 0.0
        %2691 = vmatpush1.xpose.msra.mxu0 %v2658
        %2692 = vmatprep.subr.mxu0 0.0
        %2693 = vmatpush1.xpose.msra.mxu0 %v2660
        %2694 = vmatprep.subr.mxu0 0.0
        %2695 = vmatpush1.xpose.msra.mxu0 %v2662
        %2696 = vmatprep.subr.mxu0 0.0
        %2697 = vmatpush1.xpose.msra.mxu0 %v2664
        %2698 = vmatprep.subr.mxu0 0.0
        %2699 = vmatpush1.xpose.msra.mxu0 %v2666
        %2700 = vmatprep.subr.mxu0 0.0
        %2701 = vmatpush1.xpose.msra.mxu0 %v2668
        %2702 = vmatprep.subr.mxu0 0.0
        %2703 = vmatpush1.xpose.msra.mxu0 %v2670
        %2704 = vmatprep.subr.mxu0 0.0
        %2705 = vmatpush1.xpose.msra.mxu0 %v2672
        %2706 = vmatprep.subr.mxu0 0.0
        %2707 = vmatpush1.xpose.msra.mxu0 %v2674
        %2708 = vmatprep.subr.mxu0 0.0
        %2709 = vmatpush1.xpose.msra.mxu0 %v2676
        %2710 = vmatprep.subr.mxu0 0.0
        %2711 = vmatpush1.xpose.msra.mxu0 0.0
        %2712 = vmatprep.subr.mxu0 0.0
        %2713 = vmatpush1.xpose.msra.mxu0 0.0
        %2714 = vmatprep.subr.mxu0 0.0
        %2715 = vmatpush1.xpose.msra.mxu0 0.0
        %2716 = vmatprep.subr.mxu0 0.0
        %2717 = vmatpush1.xpose.msra.mxu0 0.0
        %2718 = vmatprep.subr.mxu0 0.0
        %2719 = vmatpush1.xpose.msra.mxu0 0.0
        %2720 = vmatprep.subr.mxu0 0.0
        %2721 = vmatpush1.xpose.msra.mxu0 0.0
        %2722 = vmatprep.subr.mxu0 0.0
        %2723 = vmatpush1.xpose.msra.mxu0 0.0
        %2724 = vmatprep.subr.mxu0 0.0
        %2725 = vmatpush1.xpose.msra.mxu0 0.0
        %2726 = vmatprep.subr.mxu0 0.0
        %2727 = vmatpush1.xpose.msra.mxu0 0.0
        %2728 = vmatprep.subr.mxu0 0.0
        %2729 = vmatpush1.xpose.msra.mxu0 0.0
        %2730 = vmatprep.subr.mxu0 0.0
        %2731 = vmatpush1.xpose.msra.mxu0 0.0
        %2732 = vmatprep.subr.mxu0 0.0
        %2733 = vmatpush1.xpose.msra.mxu0 0.0
        %2734 = vmatprep.subr.mxu0 0.0
        %2735 = vmatpush1.xpose.msra.mxu0 0.0
        %2736 = vmatprep.subr.mxu0 0.0
        %2737 = vmatpush1.xpose.msra.mxu0 0.0
        %2738 = vmatprep.subr.mxu0 0.0
        %2739 = vmatpush1.xpose.msra.mxu0 0.0
        %2740 = vmatprep.subr.mxu0 0.0
        %2741 = vmatpush1.xpose.msra.mxu0 0.0
        %2742 = vmatprep.mubr.f32.mxu0 0.0
        %2743 = vmatmul.mubr.f32.gmra.mrb[0].mxu0 %v2644
        %v2744 = vpop.f32.mrb[0].mxu0
        %v2745 = vadd.f32 0.0, %v2744
        %v2746 = vpop.f32.mrb[0].mxu0
        %2747 = vdwg.mxu0
        %2748 = vst [vmem:[%s245] sm:$0x3] %v2745
        %s2749 = sand.u32 %s159, 1
        %s2750 = scalar_lea.sflag [#allocation3], %s2749
        %s2751 = sand.u32 %s159, 1
        %s2752 = smul.addr %s2751, 2
        %s2753 = scalar_lea.vmem [#allocation2], %s2752
        // Predicated region
        $region45: #{tpu_custom_call.1} parent=43 // pred_check
          %p2754 = pneg %p169
        $region46: #{tpu_custom_call.1} parent=43 // pred_check_branch
          %2756 = sbr.rel (%p2754) target = $region48
        $region47: #{tpu_custom_call.1} parent=43 // pred_region
          %s2758 = ssub.s32 32, 32
          %2759 = vsyncadd %s2750, %s2758
          %s2760 = smul.addr %s20, 32
          %s2761 = scalar_lea.hbm %s6, %s2760
          %s2763 = sshll.u32 %s2753, 4
          %s2764 = int_to_ptr.vmem [resolvable:$true] %s2763
          %2766 = dma.vmem_to_hbm [thread:$0]  %s2764, 32, %s2761, %s2750
        $region48: #{tpu_custom_call.1} parent=43 // pred_fallthru
          _
      $region44: #{tpu_custom_call.1} parent=5 // pred_fallthru
        _
      %p2767 = scmp.le.s32.totalorder 2, %s15
      // Predicated region
      $region49: #{tpu_custom_call.1} parent=5 // pred_check
        %p2768 = pneg %p2767
      $region50: #{tpu_custom_call.1} parent=5 // pred_check_branch
        %2770 = sbr.rel (%p2768) target = $region52
      $region51: #{tpu_custom_call.1} parent=5 // pred_region
        %s2771 = ssub.s32 %s15, 2
        // Predicated region
        $region53: #{tpu_custom_call.1} parent=51 // pred_check
          %p2772 = pneg %p175
        $region54: #{tpu_custom_call.1} parent=51 // pred_check_branch
          %2774 = sbr.rel (%p2772) target = $region56
        $region55: #{tpu_custom_call.1} parent=51 // pred_region
          %s2775 = sand.u32 %s160, 1
          %s2776 = scalar_lea.sflag [#allocation3], %s2775
          %s2777 = sand.u32 %s160, 1
          %s2778 = smul.addr %s2777, 2
          %s2779 = scalar_lea.vmem [#allocation2], %s2778
          %2780 = dma.done %s2776, 32
        $region56: #{tpu_custom_call.1} parent=51 // pred_fallthru
          _
      $region52: #{tpu_custom_call.1} parent=5 // pred_fallthru
        _
    $region6: #{tpu_custom_call.1} parent=1 // loop_footer
      %s19 = sadd.s32 1, %s15
    $region7: #{tpu_custom_call.1} parent=1 // loop_footer_branch
      %14 = sbr.rel target = $region3
    $region8: #{tpu_custom_call.1} parent=1 // loop_exit
      _
    %2781 = vsyncpa [#allocation3], 1
    %s2782 = scalar_lea.sflag [#allocation3], 1
    %2783 = vsyncpa %s2782, 1

</llo_original>
